<compile_context>
chip_gen: v7x
topology: tpu7x:2x2x1
jax: 0.10.0
libtpu: 0.0.40
codegen_flags: <defaults>
</compile_context>

<pallas_src>
import jax
import jax.numpy as jnp
from jax.experimental import pallas as pl
from jax.experimental.pallas import tpu as pltpu

NEG_BIG = -1e30  # bias for padded logit lanes -> exp() underflows to exactly 0


def emrnn_kernel(x_ref,     # (Tc, Bb, E)   bf16 embedded chunk, time-major
                 w0_ref,    # (E+H, H)      bf16 fused layer-0 weight [W_ih0; W_hh0]^T
                 b0_ref,    # (1, H)        f32  b_ih0 + b_hh0
                 w1_ref,    # (2H, H)       bf16 fused layer-1 weight [W_ih1; W_hh1]^T
                 b1_ref,    # (1, H)        f32  b_ih1 + b_hh1
                 wfc_ref,   # (H, O_pad)    bf16 fc weight (lane-padded with zeros)
                 bfc_ref,   # (1, O_pad)    f32  fc bias (padded lanes = NEG_BIG)
                 logp_ref,  # (Bb, O_pad)   f32  out: log_softmax(fc(h1 at t=T-1))
                 hid_ref,   # (2, Bb, H)    f32  out: final hidden state per layer
                 h0_sc,     # (Bb, H)       f32  scratch: layer-0 hidden carry
                 h1_sc):    # (Bb, H)       f32  scratch: layer-1 hidden carry
    t_blk = pl.program_id(1)
    Tc, Bb, _ = x_ref.shape
    H = h0_sc.shape[-1]

    @pl.when(t_blk == 0)
    def _init():
        h0_sc[...] = jnp.zeros_like(h0_sc)
        h1_sc[...] = jnp.zeros_like(h1_sc)

    # Hoist bias broadcasts out of the recurrence (broadcast_in_dim is not CSE'd).
    b0 = jnp.broadcast_to(b0_ref[...], (Bb, H))
    b1 = jnp.broadcast_to(b1_ref[...], (Bb, H))

    def step(t, carry):
        h0, h1 = carry                                    # f32 (Bb, H)
        x_t = x_ref[t].astype(jnp.float32)                # (Bb, E)
        # layer 0: single fused MXU pass over K = E + H
        in0 = jnp.concatenate([x_t, h0], axis=-1).astype(jnp.bfloat16)
        h0 = jnp.maximum(
            jnp.dot(in0, w0_ref[...], preferred_element_type=jnp.float32) + b0, 0.0)
        # layer 1: single fused MXU pass over K = 2H (consumes layer-0 output at t)
        in1 = jnp.concatenate([h0, h1], axis=-1).astype(jnp.bfloat16)
        h1 = jnp.maximum(
            jnp.dot(in1, w1_ref[...], preferred_element_type=jnp.float32) + b1, 0.0)
        return h0, h1

    # Fully unrolled short recurrence: lets the LLO scheduler overlap the x loads,
    # MXU push/pop and VPU work of adjacent timesteps within the serial h-chain.
    h0, h1 = jax.lax.fori_loop(0, Tc, step, (h0_sc[...], h1_sc[...]), unroll=True)
    h0_sc[...] = h0
    h1_sc[...] = h1

    @pl.when(t_blk == pl.num_programs(1) - 1)
    def _finish():
        # fc on the last timestep of the top layer + log_softmax(dim=1), computed
        # on a lane-dense O_pad-wide slab (padded logits ~ -1e30 -> exp == 0).
        logits = jnp.dot(h1.astype(jnp.bfloat16), wfc_ref[...],
                         preferred_element_type=jnp.float32) + bfc_ref[...]
        m = jnp.max(logits, axis=1, keepdims=True)
        lse = jnp.log(jnp.sum(jnp.exp(logits - m), axis=1, keepdims=True)) + m
        logp_ref[...] = logits - lse
        hid_ref[0] = h0
        hid_ref[1] = h1


def emrnn_forward(inputs, emb_matrix, params, *, batch_block=16, time_chunk=4):
    """inputs: (B, T) int32 token ids. Returns (log_probs (B, O), hidden (2, B, H))."""
    f32 = jnp.float32
    B0, T = inputs.shape
    H = params["whh0"].shape[0]
    E = params["wih0"].shape[1]
    O = params["wfc"].shape[0]
    assert E % 128 == 0 and H % 128 == 0, "embed/hidden dims must be multiples of 128"
    assert batch_block % 16 == 0, "batch block must be a multiple of the bf16 sublane tile"
    O_pad = ((O + 127) // 128) * 128

    # Pad batch to a multiple of the batch block; pick a time chunk dividing T.
    Bb = batch_block
    pad_b = (-B0) % Bb
    if pad_b:
        inputs = jnp.pad(inputs, ((0, pad_b), (0, 0)))
    B = B0 + pad_b
    Tc = time_chunk if T % time_chunk == 0 else T

    # Glue: embedding gather straight into bf16 and time-major layout (gathering on
    # the transposed id matrix avoids a separate (B,T,E) activation transpose pass).
    # TODO(synk): move the gather in-kernel (PrefetchScalarGridSpec token ids + DMA
    # from emb_matrix in HBM) to also skip this XLA gather round trip for long T.
    x_tbe = jnp.take(emb_matrix.astype(jnp.bfloat16), inputs.T, axis=0)   # (T, B, E)

    # Glue: fuse [W_ih; W_hh] along K, pre-transpose to (in, out), combine biases,
    # lane-pad the classifier to O_pad.
    w0 = jnp.concatenate([params["wih0"], params["whh0"]], axis=1).T.astype(jnp.bfloat16)
    w1 = jnp.concatenate([params["wih1"], params["whh1"]], axis=1).T.astype(jnp.bfloat16)
    b0 = (params["bih0"] + params["bhh0"]).reshape(1, H).astype(f32)
    b1 = (params["bih1"] + params["bhh1"]).reshape(1, H).astype(f32)
    wfc = jnp.pad(params["wfc"].T, ((0, 0), (0, O_pad - O))).astype(jnp.bfloat16)
    bfc = jnp.concatenate(
        [params["bfc"].astype(f32), jnp.full((O_pad - O,), NEG_BIG, f32)]).reshape(1, O_pad)

    grid = (B // Bb, T // Tc)
    grid_spec = pltpu.PrefetchScalarGridSpec(
        num_scalar_prefetch=0,
        grid=grid,
        in_specs=[
            pl.BlockSpec((Tc, Bb, E), lambda b, t: (t, b, 0)),   # streamed x chunk
            pl.BlockSpec((E + H, H), lambda b, t: (0, 0)),       # resident weights
            pl.BlockSpec((1, H), lambda b, t: (0, 0)),
            pl.BlockSpec((2 * H, H), lambda b, t: (0, 0)),
            pl.BlockSpec((1, H), lambda b, t: (0, 0)),
            pl.BlockSpec((H, O_pad), lambda b, t: (0, 0)),
            pl.BlockSpec((1, O_pad), lambda b, t: (0, 0)),
        ],
        out_specs=(
            pl.BlockSpec((Bb, O_pad), lambda b, t: (b, 0)),
            pl.BlockSpec((2, Bb, H), lambda b, t: (0, b, 0)),
        ),
        scratch_shapes=[
            pltpu.VMEM((Bb, H), f32),
            pltpu.VMEM((Bb, H), f32),
        ],
    )

    # VMEM limit sized from the actual resident set (double-buffered x chunk +
    # weights + biases + outputs + scratch), with generous headroom.
    resident = (2 * Tc * Bb * E * 2
                + 2 * ((E + H) * H + 2 * H * H + H * O_pad) * 2
                + (2 * H + O_pad) * 4
                + 2 * (Bb * O_pad + 2 * Bb * H) * 4
                + 2 * Bb * H * 4)
    vmem_limit = int(min(100 * 1024 * 1024, max(4 * resident, 8 * 1024 * 1024)))

    flops = 2 * B * T * ((E + H) * H + 2 * H * H) + 2 * B * H * O_pad
    bytes_accessed = int(x_tbe.size * 2 + (w0.size + w1.size + wfc.size) * 2
                         + (b0.size + b1.size + bfc.size) * 4
                         + (B * O_pad + 2 * B * H) * 4)
    cost = pl.CostEstimate(flops=flops, transcendentals=B * O_pad,
                           bytes_accessed=bytes_accessed)

    logp_full, hidden = pl.pallas_call(
        emrnn_kernel,
        out_shape=(
            jax.ShapeDtypeStruct((B, O_pad), f32),
            jax.ShapeDtypeStruct((2, B, H), f32),
        ),
        grid_spec=grid_spec,
        compiler_params=pltpu.CompilerParams(
            dimension_semantics=("parallel", "arbitrary"),
            vmem_limit_bytes=vmem_limit,
        ),
        cost_estimate=cost,
    )(x_tbe, w0, b0, w1, b1, wfc, bfc)

    return logp_full[:B0, :O], hidden[:, :B0, :]


def make_params(key, vocab, embed_dim, hidden, output_dim):
    """Deterministic synthetic parameters mimicking nn.RNN / nn.Linear init ranges."""
    keys = jax.random.split(key, 12)
    k = 1.0 / jnp.sqrt(hidden)
    u = lambda kk, shape, bound: jax.random.uniform(kk, shape, jnp.float32, -bound, bound)
    params = dict(
        wih0=u(keys[0], (hidden, embed_dim), k),
        whh0=u(keys[1], (hidden, hidden), k),
        bih0=u(keys[2], (hidden,), k),
        bhh0=u(keys[3], (hidden,), k),
        wih1=u(keys[4], (hidden, hidden), k),
        whh1=u(keys[5], (hidden, hidden), k),
        bih1=u(keys[6], (hidden,), k),
        bhh1=u(keys[7], (hidden,), k),
        wfc=u(keys[8], (output_dim, hidden), k),
        bfc=u(keys[9], (output_dim,), k),
    )
    emb_matrix = jax.random.normal(keys[10], (vocab, embed_dim), jnp.float32) * 0.1
    return params, emb_matrix


def reference_forward(inputs, emb_matrix, params):
    """Pure-JAX reference mirroring the kernel's mixed precision (bf16 operands,
    f32 accumulation / state), ReLU nonlinearity, last-step FC + log-softmax."""
    f32 = jnp.float32
    rbf = lambda a: a.astype(jnp.bfloat16).astype(f32)   # bf16 rounding, f32 math
    emb = jnp.take(rbf(emb_matrix), inputs, axis=0)       # (B, T, E)
    B, T, _ = emb.shape
    H = params["whh0"].shape[0]
    h0 = jnp.zeros((B, H), f32)
    h1 = jnp.zeros((B, H), f32)
    for t in range(T):
        x_t = emb[:, t, :]
        pre0 = (x_t @ rbf(params["wih0"]).T + rbf(h0) @ rbf(params["whh0"]).T
                + params["bih0"] + params["bhh0"])
        h0 = jnp.maximum(pre0, 0.0)
        pre1 = (rbf(h0) @ rbf(params["wih1"]).T + rbf(h1) @ rbf(params["whh1"]).T
                + params["bih1"] + params["bhh1"])
        h1 = jnp.maximum(pre1, 0.0)
    logits = rbf(h1) @ rbf(params["wfc"]).T + params["bfc"]
    logp = logits - jax.scipy.special.logsumexp(logits, axis=1, keepdims=True)
    hidden = jnp.stack([h0, h1], axis=0)
    return logp, hidden


if __name__ == "__main__":
    # Small, hardware-aligned shapes consistent with the module
    # (Embedding -> RNN(n_layers=2, relu) -> Linear(6) -> LogSoftmax).
    B, T = 32, 8
    VOCAB, EMBED_DIM, HIDDEN, OUTPUT_DIM = 64, 128, 128, 6

    key = jax.random.PRNGKey(0)
    kp, kx = jax.random.split(key)
    params, emb_matrix = make_params(kp, VOCAB, EMBED_DIM, HIDDEN, OUTPUT_DIM)
    inputs = jax.random.randint(kx, (B, T), 0, VOCAB, dtype=jnp.int32)

    forward = jax.jit(emrnn_forward)
    logp, hidden = forward(inputs, emb_matrix, params)
    jax.block_until_ready((logp, hidden))

    ref_logp, ref_hidden = reference_forward(inputs, emb_matrix, params)
    assert logp.shape == (B, OUTPUT_DIM) and hidden.shape == (2, B, HIDDEN)
    assert jnp.allclose(logp, ref_logp, atol=5e-3, rtol=5e-3), \
        float(jnp.max(jnp.abs(logp - ref_logp)))
    assert jnp.allclose(hidden, ref_hidden, atol=5e-3, rtol=5e-3), \
        float(jnp.max(jnp.abs(hidden - ref_hidden)))

    print("KERNEL_OK")
</pallas_src>

<mosaic_0001>
module attributes {stable_mosaic.version = 11 : i64} {
  func.func @emrnn_kernel(%arg0: i32, %arg1: i32, %arg2: memref<4x16x128xbf16, #tpu.memory_space<vmem>>, %arg3: memref<256x128xbf16, #tpu.memory_space<vmem>>, %arg4: memref<1x128xf32, #tpu.memory_space<vmem>>, %arg5: memref<256x128xbf16, #tpu.memory_space<vmem>>, %arg6: memref<1x128xf32, #tpu.memory_space<vmem>>, %arg7: memref<128x128xbf16, #tpu.memory_space<vmem>>, %arg8: memref<1x128xf32, #tpu.memory_space<vmem>>, %arg9: memref<16x128xf32, #tpu.memory_space<vmem>>, %arg10: memref<2x16x128xf32, #tpu.memory_space<vmem>>, %arg11: memref<16x128xf32, #tpu.memory_space<vmem>>, %arg12: memref<16x128xf32, #tpu.memory_space<vmem>>) attributes {dimension_semantics = [#tpu.dimension_semantics<parallel>, #tpu.dimension_semantics<arbitrary>], iteration_bounds = array<i64: 2, 2>, scalar_prefetch = 0 : i64, scratch_operands = 2 : i64, tpu.core_type = #tpu.core_type<tc>, window_params = [{transform_indices = @transform_0, window_bounds = array<i64: 4, 16, 128>}, {pipeline_mode = #tpu.pipeline_mode<synchronous>, transform_indices = @transform_1, window_bounds = array<i64: 256, 128>}, {pipeline_mode = #tpu.pipeline_mode<synchronous>, transform_indices = @transform_2, window_bounds = array<i64: 1, 128>}, {pipeline_mode = #tpu.pipeline_mode<synchronous>, transform_indices = @transform_3, window_bounds = array<i64: 256, 128>}, {pipeline_mode = #tpu.pipeline_mode<synchronous>, transform_indices = @transform_4, window_bounds = array<i64: 1, 128>}, {pipeline_mode = #tpu.pipeline_mode<synchronous>, transform_indices = @transform_5, window_bounds = array<i64: 128, 128>}, {pipeline_mode = #tpu.pipeline_mode<synchronous>, transform_indices = @transform_6, window_bounds = array<i64: 1, 128>}, {transform_indices = @transform_7, window_bounds = array<i64: 16, 128>}, {transform_indices = @transform_8, window_bounds = array<i64: 2, 16, 128>}]} {
    %c0_i32 = arith.constant 0 : i32
    %0 = arith.cmpi eq, %arg1, %c0_i32 : i32
    %1 = arith.extui %0 : i1 to i32
    %c0_i32_0 = arith.constant 0 : i32
    %2 = arith.cmpi ne, %1, %c0_i32_0 : i32
    scf.if %2 {
      %cst_54 = arith.constant 0.000000e+00 : f32
      %88 = vector.broadcast %cst_54 : f32 to vector<16x128xf32>
      %c0_55 = arith.constant 0 : index
      %c0_56 = arith.constant 0 : index
      %89 = vector.load %arg11[%c0_55, %c0_56] : memref<16x128xf32, #tpu.memory_space<vmem>>, vector<16x128xf32>
      tpu.vector_store %arg11[%c0_55, %c0_56], %88 {strides = array<i32>} : memref<16x128xf32, #tpu.memory_space<vmem>>, vector<16x128xf32>,
      %cst_57 = arith.constant 0.000000e+00 : f32
      %90 = vector.broadcast %cst_57 : f32 to vector<16x128xf32>
      %c0_58 = arith.constant 0 : index
      %c0_59 = arith.constant 0 : index
      %91 = vector.load %arg12[%c0_58, %c0_59] : memref<16x128xf32, #tpu.memory_space<vmem>>, vector<16x128xf32>
      tpu.vector_store %arg12[%c0_58, %c0_59], %90 {strides = array<i32>} : memref<16x128xf32, #tpu.memory_space<vmem>>, vector<16x128xf32>,
    } else {
    }
    %c0 = arith.constant 0 : index
    %c0_1 = arith.constant 0 : index
    %3 = vector.load %arg4[%c0, %c0_1] : memref<1x128xf32, #tpu.memory_space<vmem>>, vector<1x128xf32>
    %4 = vector.shape_cast %3 : vector<1x128xf32> to vector<1x128xf32>
    %5 = vector.broadcast %4 : vector<1x128xf32> to vector<16x128xf32>
    %c0_2 = arith.constant 0 : index
    %c0_3 = arith.constant 0 : index
    %6 = vector.load %arg6[%c0_2, %c0_3] : memref<1x128xf32, #tpu.memory_space<vmem>>, vector<1x128xf32>
    %7 = vector.shape_cast %6 : vector<1x128xf32> to vector<1x128xf32>
    %8 = vector.broadcast %7 : vector<1x128xf32> to vector<16x128xf32>
    %c0_4 = arith.constant 0 : index
    %c0_5 = arith.constant 0 : index
    %9 = vector.load %arg11[%c0_4, %c0_5] : memref<16x128xf32, #tpu.memory_space<vmem>>, vector<16x128xf32>
    %c0_6 = arith.constant 0 : index
    %c0_7 = arith.constant 0 : index
    %10 = vector.load %arg12[%c0_6, %c0_7] : memref<16x128xf32, #tpu.memory_space<vmem>>, vector<16x128xf32>
    %c0_i32_8 = arith.constant 0 : i32
    %11 = arith.index_cast %c0_i32_8 : i32 to index
    %c0_9 = arith.constant 0 : index
    %c0_10 = arith.constant 0 : index
    %12 = vector.load %arg2[%11, %c0_9, %c0_10] : memref<4x16x128xbf16, #tpu.memory_space<vmem>>, vector<1x16x128xbf16>
    %13 = vector.shape_cast %12 : vector<1x16x128xbf16> to vector<16x128xbf16>
    %14 = arith.extf %13 : vector<16x128xbf16> to vector<16x128xf32>
    %15 = tpu.concatenate %14, %9 in 1 : vector<16x128xf32>, vector<16x128xf32> -> vector<16x256xf32>
    %16 = arith.truncf %15 : vector<16x256xf32> to vector<16x256xbf16>
    %c0_11 = arith.constant 0 : index
    %c0_12 = arith.constant 0 : index
    %17 = vector.load %arg3[%c0_11, %c0_12] : memref<256x128xbf16, #tpu.memory_space<vmem>>, vector<256x128xbf16>
    %cst = arith.constant dense<0.000000e+00> : vector<16x128xf32>
    %18 = tpu.matmul %16, %17, %cst {dimension_numbers = #tpu.dot_dimension_numbers<[1], [0], [0], [1], [0, 0, 1, 1], [], []>} : vector<16x256xbf16>, vector<256x128xbf16>, vector<16x128xf32> -> vector<16x128xf32>
    %19 = arith.addf %18, %5 : vector<16x128xf32>
    %cst_13 = arith.constant 0.000000e+00 : f32
    %20 = vector.broadcast %cst_13 : f32 to vector<16x128xf32>
    %21 = arith.maximumf %19, %20 : vector<16x128xf32>
    %22 = tpu.concatenate %21, %10 in 1 : vector<16x128xf32>, vector<16x128xf32> -> vector<16x256xf32>
    %23 = arith.truncf %22 : vector<16x256xf32> to vector<16x256xbf16>
    %c0_14 = arith.constant 0 : index
    %c0_15 = arith.constant 0 : index
    %24 = vector.load %arg5[%c0_14, %c0_15] : memref<256x128xbf16, #tpu.memory_space<vmem>>, vector<256x128xbf16>
    %cst_16 = arith.constant dense<0.000000e+00> : vector<16x128xf32>
    %25 = tpu.matmul %23, %24, %cst_16 {dimension_numbers = #tpu.dot_dimension_numbers<[1], [0], [0], [1], [0, 0, 1, 1], [], []>} : vector<16x256xbf16>, vector<256x128xbf16>, vector<16x128xf32> -> vector<16x128xf32>
    %26 = arith.addf %25, %8 : vector<16x128xf32>
    %cst_17 = arith.constant 0.000000e+00 : f32
    %27 = vector.broadcast %cst_17 : f32 to vector<16x128xf32>
    %28 = arith.maximumf %26, %27 : vector<16x128xf32>
    %c1_i32 = arith.constant 1 : i32
    %29 = arith.index_cast %c1_i32 : i32 to index
    %c0_18 = arith.constant 0 : index
    %c0_19 = arith.constant 0 : index
    %30 = vector.load %arg2[%29, %c0_18, %c0_19] : memref<4x16x128xbf16, #tpu.memory_space<vmem>>, vector<1x16x128xbf16>
    %31 = vector.shape_cast %30 : vector<1x16x128xbf16> to vector<16x128xbf16>
    %32 = arith.extf %31 : vector<16x128xbf16> to vector<16x128xf32>
    %33 = tpu.concatenate %32, %21 in 1 : vector<16x128xf32>, vector<16x128xf32> -> vector<16x256xf32>
    %34 = arith.truncf %33 : vector<16x256xf32> to vector<16x256xbf16>
    %c0_20 = arith.constant 0 : index
    %c0_21 = arith.constant 0 : index
    %35 = vector.load %arg3[%c0_20, %c0_21] : memref<256x128xbf16, #tpu.memory_space<vmem>>, vector<256x128xbf16>
    %cst_22 = arith.constant dense<0.000000e+00> : vector<16x128xf32>
    %36 = tpu.matmul %34, %35, %cst_22 {dimension_numbers = #tpu.dot_dimension_numbers<[1], [0], [0], [1], [0, 0, 1, 1], [], []>} : vector<16x256xbf16>, vector<256x128xbf16>, vector<16x128xf32> -> vector<16x128xf32>
    %37 = arith.addf %36, %5 : vector<16x128xf32>
    %cst_23 = arith.constant 0.000000e+00 : f32
    %38 = vector.broadcast %cst_23 : f32 to vector<16x128xf32>
    %39 = arith.maximumf %37, %38 : vector<16x128xf32>
    %40 = tpu.concatenate %39, %28 in 1 : vector<16x128xf32>, vector<16x128xf32> -> vector<16x256xf32>
    %41 = arith.truncf %40 : vector<16x256xf32> to vector<16x256xbf16>
    %c0_24 = arith.constant 0 : index
    %c0_25 = arith.constant 0 : index
    %42 = vector.load %arg5[%c0_24, %c0_25] : memref<256x128xbf16, #tpu.memory_space<vmem>>, vector<256x128xbf16>
    %cst_26 = arith.constant dense<0.000000e+00> : vector<16x128xf32>
    %43 = tpu.matmul %41, %42, %cst_26 {dimension_numbers = #tpu.dot_dimension_numbers<[1], [0], [0], [1], [0, 0, 1, 1], [], []>} : vector<16x256xbf16>, vector<256x128xbf16>, vector<16x128xf32> -> vector<16x128xf32>
    %44 = arith.addf %43, %8 : vector<16x128xf32>
    %cst_27 = arith.constant 0.000000e+00 : f32
    %45 = vector.broadcast %cst_27 : f32 to vector<16x128xf32>
    %46 = arith.maximumf %44, %45 : vector<16x128xf32>
    %c2_i32 = arith.constant 2 : i32
    %47 = arith.index_cast %c2_i32 : i32 to index
    %c0_28 = arith.constant 0 : index
    %c0_29 = arith.constant 0 : index
    %48 = vector.load %arg2[%47, %c0_28, %c0_29] : memref<4x16x128xbf16, #tpu.memory_space<vmem>>, vector<1x16x128xbf16>
    %49 = vector.shape_cast %48 : vector<1x16x128xbf16> to vector<16x128xbf16>
    %50 = arith.extf %49 : vector<16x128xbf16> to vector<16x128xf32>
    %51 = tpu.concatenate %50, %39 in 1 : vector<16x128xf32>, vector<16x128xf32> -> vector<16x256xf32>
    %52 = arith.truncf %51 : vector<16x256xf32> to vector<16x256xbf16>
    %c0_30 = arith.constant 0 : index
    %c0_31 = arith.constant 0 : index
    %53 = vector.load %arg3[%c0_30, %c0_31] : memref<256x128xbf16, #tpu.memory_space<vmem>>, vector<256x128xbf16>
    %cst_32 = arith.constant dense<0.000000e+00> : vector<16x128xf32>
    %54 = tpu.matmul %52, %53, %cst_32 {dimension_numbers = #tpu.dot_dimension_numbers<[1], [0], [0], [1], [0, 0, 1, 1], [], []>} : vector<16x256xbf16>, vector<256x128xbf16>, vector<16x128xf32> -> vector<16x128xf32>
    %55 = arith.addf %54, %5 : vector<16x128xf32>
    %cst_33 = arith.constant 0.000000e+00 : f32
    %56 = vector.broadcast %cst_33 : f32 to vector<16x128xf32>
    %57 = arith.maximumf %55, %56 : vector<16x128xf32>
    %58 = tpu.concatenate %57, %46 in 1 : vector<16x128xf32>, vector<16x128xf32> -> vector<16x256xf32>
    %59 = arith.truncf %58 : vector<16x256xf32> to vector<16x256xbf16>
    %c0_34 = arith.constant 0 : index
    %c0_35 = arith.constant 0 : index
    %60 = vector.load %arg5[%c0_34, %c0_35] : memref<256x128xbf16, #tpu.memory_space<vmem>>, vector<256x128xbf16>
    %cst_36 = arith.constant dense<0.000000e+00> : vector<16x128xf32>
    %61 = tpu.matmul %59, %60, %cst_36 {dimension_numbers = #tpu.dot_dimension_numbers<[1], [0], [0], [1], [0, 0, 1, 1], [], []>} : vector<16x256xbf16>, vector<256x128xbf16>, vector<16x128xf32> -> vector<16x128xf32>
    %62 = arith.addf %61, %8 : vector<16x128xf32>
    %cst_37 = arith.constant 0.000000e+00 : f32
    %63 = vector.broadcast %cst_37 : f32 to vector<16x128xf32>
    %64 = arith.maximumf %62, %63 : vector<16x128xf32>
    %c3_i32 = arith.constant 3 : i32
    %65 = arith.index_cast %c3_i32 : i32 to index
    %c0_38 = arith.constant 0 : index
    %c0_39 = arith.constant 0 : index
    %66 = vector.load %arg2[%65, %c0_38, %c0_39] : memref<4x16x128xbf16, #tpu.memory_space<vmem>>, vector<1x16x128xbf16>
    %67 = vector.shape_cast %66 : vector<1x16x128xbf16> to vector<16x128xbf16>
    %68 = arith.extf %67 : vector<16x128xbf16> to vector<16x128xf32>
    %69 = tpu.concatenate %68, %57 in 1 : vector<16x128xf32>, vector<16x128xf32> -> vector<16x256xf32>
    %70 = arith.truncf %69 : vector<16x256xf32> to vector<16x256xbf16>
    %c0_40 = arith.constant 0 : index
    %c0_41 = arith.constant 0 : index
    %71 = vector.load %arg3[%c0_40, %c0_41] : memref<256x128xbf16, #tpu.memory_space<vmem>>, vector<256x128xbf16>
    %cst_42 = arith.constant dense<0.000000e+00> : vector<16x128xf32>
    %72 = tpu.matmul %70, %71, %cst_42 {dimension_numbers = #tpu.dot_dimension_numbers<[1], [0], [0], [1], [0, 0, 1, 1], [], []>} : vector<16x256xbf16>, vector<256x128xbf16>, vector<16x128xf32> -> vector<16x128xf32>
    %73 = arith.addf %72, %5 : vector<16x128xf32>
    %cst_43 = arith.constant 0.000000e+00 : f32
    %74 = vector.broadcast %cst_43 : f32 to vector<16x128xf32>
    %75 = arith.maximumf %73, %74 : vector<16x128xf32>
    %76 = tpu.concatenate %75, %64 in 1 : vector<16x128xf32>, vector<16x128xf32> -> vector<16x256xf32>
    %77 = arith.truncf %76 : vector<16x256xf32> to vector<16x256xbf16>
    %c0_44 = arith.constant 0 : index
    %c0_45 = arith.constant 0 : index
    %78 = vector.load %arg5[%c0_44, %c0_45] : memref<256x128xbf16, #tpu.memory_space<vmem>>, vector<256x128xbf16>
    %cst_46 = arith.constant dense<0.000000e+00> : vector<16x128xf32>
    %79 = tpu.matmul %77, %78, %cst_46 {dimension_numbers = #tpu.dot_dimension_numbers<[1], [0], [0], [1], [0, 0, 1, 1], [], []>} : vector<16x256xbf16>, vector<256x128xbf16>, vector<16x128xf32> -> vector<16x128xf32>
    %80 = arith.addf %79, %8 : vector<16x128xf32>
    %cst_47 = arith.constant 0.000000e+00 : f32
    %81 = vector.broadcast %cst_47 : f32 to vector<16x128xf32>
    %82 = arith.maximumf %80, %81 : vector<16x128xf32>
    %c4_i32 = arith.constant 4 : i32
    %c0_48 = arith.constant 0 : index
    %c0_49 = arith.constant 0 : index
    %83 = vector.load %arg11[%c0_48, %c0_49] : memref<16x128xf32, #tpu.memory_space<vmem>>, vector<16x128xf32>
    tpu.vector_store %arg11[%c0_48, %c0_49], %75 {strides = array<i32>} : memref<16x128xf32, #tpu.memory_space<vmem>>, vector<16x128xf32>,
    %c0_50 = arith.constant 0 : index
    %c0_51 = arith.constant 0 : index
    %84 = vector.load %arg12[%c0_50, %c0_51] : memref<16x128xf32, #tpu.memory_space<vmem>>, vector<16x128xf32>
    tpu.vector_store %arg12[%c0_50, %c0_51], %82 {strides = array<i32>} : memref<16x128xf32, #tpu.memory_space<vmem>>, vector<16x128xf32>,
    %c1_i32_52 = arith.constant 1 : i32
    %85 = arith.cmpi eq, %arg1, %c1_i32_52 : i32
    %86 = arith.extui %85 : i1 to i32
    %c0_i32_53 = arith.constant 0 : i32
    %87 = arith.cmpi ne, %86, %c0_i32_53 : i32
    scf.if %87 {
      %88 = arith.truncf %82 : vector<16x128xf32> to vector<16x128xbf16>
      %c0_54 = arith.constant 0 : index
      %c0_55 = arith.constant 0 : index
      %89 = vector.load %arg7[%c0_54, %c0_55] : memref<128x128xbf16, #tpu.memory_space<vmem>>, vector<128x128xbf16>
      %cst_56 = arith.constant dense<0.000000e+00> : vector<16x128xf32>
      %90 = tpu.matmul %88, %89, %cst_56 {dimension_numbers = #tpu.dot_dimension_numbers<[1], [0], [0], [1], [0, 0, 1, 1], [], []>} : vector<16x128xbf16>, vector<128x128xbf16>, vector<16x128xf32> -> vector<16x128xf32>
      %c0_57 = arith.constant 0 : index
      %c0_58 = arith.constant 0 : index
      %91 = vector.load %arg8[%c0_57, %c0_58] : memref<1x128xf32, #tpu.memory_space<vmem>>, vector<1x128xf32>
      %92 = vector.broadcast %91 : vector<1x128xf32> to vector<16x128xf32>
      %93 = arith.addf %90, %92 : vector<16x128xf32>
      %cst_59 = arith.constant dense<0xFF800000> : vector<16xf32>
      %94 = vector.multi_reduction <maximumf>, %93, %cst_59 [1] : vector<16x128xf32> to vector<16xf32>
      %95 = vector.shape_cast %94 : vector<16xf32> to vector<16x1xf32>
      %96 = vector.broadcast %95 : vector<16x1xf32> to vector<16x128xf32>
      %97 = arith.subf %93, %96 : vector<16x128xf32>
      %98 = math.exp %97 : vector<16x128xf32>
      %cst_60 = arith.constant dense<0.000000e+00> : vector<16xf32>
      %99 = vector.multi_reduction <add>, %98, %cst_60 [1] : vector<16x128xf32> to vector<16xf32>
      %100 = vector.shape_cast %99 : vector<16xf32> to vector<16x1xf32>
      %101 = math.log %100 : vector<16x1xf32>
      %102 = arith.addf %101, %95 : vector<16x1xf32>
      %103 = vector.broadcast %102 : vector<16x1xf32> to vector<16x128xf32>
      %104 = arith.subf %93, %103 : vector<16x128xf32>
      %c0_61 = arith.constant 0 : index
      %c0_62 = arith.constant 0 : index
      %105 = vector.load %arg9[%c0_61, %c0_62] : memref<16x128xf32, #tpu.memory_space<vmem>>, vector<16x128xf32>
      tpu.vector_store %arg9[%c0_61, %c0_62], %104 {strides = array<i32>} : memref<16x128xf32, #tpu.memory_space<vmem>>, vector<16x128xf32>,
      %c0_63 = arith.constant 0 : index
      %c0_64 = arith.constant 0 : index
      %c0_65 = arith.constant 0 : index
      %106 = vector.load %arg10[%c0_63, %c0_64, %c0_65] : memref<2x16x128xf32, #tpu.memory_space<vmem>>, vector<1x16x128xf32>
      %107 = vector.shape_cast %106 : vector<1x16x128xf32> to vector<16x128xf32>
      %108 = vector.shape_cast %75 : vector<16x128xf32> to vector<1x16x128xf32>
      tpu.vector_store %arg10[%c0_63, %c0_64, %c0_65], %108 {strides = array<i32>} : memref<2x16x128xf32, #tpu.memory_space<vmem>>, vector<1x16x128xf32>,
      %c1 = arith.constant 1 : index
      %c0_66 = arith.constant 0 : index
      %c0_67 = arith.constant 0 : index
      %109 = vector.load %arg10[%c1, %c0_66, %c0_67] : memref<2x16x128xf32, #tpu.memory_space<vmem>>, vector<1x16x128xf32>
      %110 = vector.shape_cast %109 : vector<1x16x128xf32> to vector<16x128xf32>
      %111 = vector.shape_cast %82 : vector<16x128xf32> to vector<1x16x128xf32>
      tpu.vector_store %arg10[%c1, %c0_66, %c0_67], %111 {strides = array<i32>} : memref<2x16x128xf32, #tpu.memory_space<vmem>>, vector<1x16x128xf32>,
    } else {
    }
    return
  }
  func.func @transform_0(%arg0: i32, %arg1: i32) -> (i32, i32, i32) {
    %c0_i32 = arith.constant 0 : i32
    %c0_i32_0 = arith.constant 0 : i32
    return %arg1, %arg0, %c0_i32 : i32, i32, i32
  }
  func.func @transform_1(%arg0: i32, %arg1: i32) -> (i32, i32) {
    %c0_i32 = arith.constant 0 : i32
    %c0_i32_0 = arith.constant 0 : i32
    %c0_i32_1 = arith.constant 0 : i32
    return %c0_i32, %c0_i32_0 : i32, i32
  }
  func.func @transform_2(%arg0: i32, %arg1: i32) -> (i32, i32) {
    %c0_i32 = arith.constant 0 : i32
    %c0_i32_0 = arith.constant 0 : i32
    %c0_i32_1 = arith.constant 0 : i32
    return %c0_i32, %c0_i32_0 : i32, i32
  }
  func.func @transform_3(%arg0: i32, %arg1: i32) -> (i32, i32) {
    %c0_i32 = arith.constant 0 : i32
    %c0_i32_0 = arith.constant 0 : i32
    %c0_i32_1 = arith.constant 0 : i32
    return %c0_i32, %c0_i32_0 : i32, i32
  }
  func.func @transform_4(%arg0: i32, %arg1: i32) -> (i32, i32) {
    %c0_i32 = arith.constant 0 : i32
    %c0_i32_0 = arith.constant 0 : i32
    %c0_i32_1 = arith.constant 0 : i32
    return %c0_i32, %c0_i32_0 : i32, i32
  }
  func.func @transform_5(%arg0: i32, %arg1: i32) -> (i32, i32) {
    %c0_i32 = arith.constant 0 : i32
    %c0_i32_0 = arith.constant 0 : i32
    %c0_i32_1 = arith.constant 0 : i32
    return %c0_i32, %c0_i32_0 : i32, i32
  }
  func.func @transform_6(%arg0: i32, %arg1: i32) -> (i32, i32) {
    %c0_i32 = arith.constant 0 : i32
    %c0_i32_0 = arith.constant 0 : i32
    %c0_i32_1 = arith.constant 0 : i32
    return %c0_i32, %c0_i32_0 : i32, i32
  }
  func.func @transform_7(%arg0: i32, %arg1: i32) -> (i32, i32) {
    %c0_i32 = arith.constant 0 : i32
    %c0_i32_0 = arith.constant 0 : i32
    return %arg0, %c0_i32 : i32, i32
  }
  func.func @transform_8(%arg0: i32, %arg1: i32) -> (i32, i32, i32) {
    %c0_i32 = arith.constant 0 : i32
    %c0_i32_0 = arith.constant 0 : i32
    %c0_i32_1 = arith.constant 0 : i32
    return %c0_i32, %arg0, %c0_i32_0 : i32, i32, i32
  }
}

</mosaic_0001>

<llo_original>
// kernel: emrnn_forward.1
$region0: #{emrnn_forward.1}
  #allocation0 [shape = 'u32[]', space=smem, size = 0x4, offset = 0x4, fixed_abs, tag = 'smem constant byte address 0x4 - core index']
  #allocation1 [shape = 'u32[144,128]{1,0:T(1,128)}', space=vmem, size = 0x12000, scoped, tag = 'internal scratch']
  #allocation2 [shape = 'f32[16,128]{1,0:T(8,128)}', space=vmem, size = 0x2000, scoped, tag = 'scratch operand']
  #allocation3 [shape = 'f32[16,128]{1,0:T(8,128)}', space=vmem, size = 0x2000, scoped, tag = 'scratch operand']
  #allocation7 [shape = 's32[]', space=sflag, size = 0x4, offset = 0, fixed_abs, tag = 'sflag constant byte address 0x0 - dummy sync flag']
  %s0 = inlined_call_operand.vmem [shape: bf16[8,32,128], index: 0, kind: input, shape index: {}]
  %s1 = inlined_call_operand.vmem [shape: bf16[256,128], index: 1, kind: input, shape index: {}]
  %s2 = inlined_call_operand.vmem [shape: f32[1,128], index: 2, kind: input, shape index: {}]
  %s3 = inlined_call_operand.vmem [shape: bf16[256,128], index: 3, kind: input, shape index: {}]
  %s4 = inlined_call_operand.vmem [shape: f32[1,128], index: 4, kind: input, shape index: {}]
  %s5 = inlined_call_operand.vmem [shape: bf16[128,128], index: 5, kind: input, shape index: {}]
  %s6 = inlined_call_operand.vmem [shape: f32[1,128], index: 6, kind: input, shape index: {}]
  %s7 = inlined_call_operand.vmem [shape: f32[32,128], index: 7, kind: output, shape index: {0}]
  %s8 = inlined_call_operand.hbm [shape: f32[2,32,128], index: 8, kind: output, shape index: {1}]
  %9 = xla_tuple %s7, %s8
  %s10 = sld [smem:[#allocation0]]
  $region118: #{emrnn_forward.1} parent=0
    _
  %s12 = ssub.s32 1, %s10
  %s13 = scalar_select 0, %s12, %s10
  $region1: #{emrnn_forward.1} parent=0
    #allocation4 [shape = 'u8[32768]{0}', space=vmem, size = 0x8000, scoped, tag = 'input window, operand 0']
    #allocation5 [shape = 'u8[32768]{0}', space=vmem, size = 0x8000, scoped, tag = 'output window, operand 1']
    #allocation6 [shape = 's32[2]{0}', space=sflag, size = 0x8, scoped, tag = 'scoped memory for emrnn_forward.1']
    %14 = vsyncpa [#allocation6], 0
    %s15 = scalar_lea.sflag [#allocation6], 1
    %16 = vsyncpa %s15, 0
    loop: start=0, step=1, limit=6
    $region2: #{emrnn_forward.1} parent=1 // loop_pre_header
      _
    $region3: #{emrnn_forward.1} parent=1 // loop_header
      %s18 = sphi 0, %s22
      %p19 = scmp.ge.s32.totalorder %s18, 6
      %s25 = sphi 0, %s37
      %s26 = sphi 0, %s33
      %s27 = sphi 0, %s25
      %s28 = sphi 0, %s26
      %s29 = sphi 0, %s27
      %s30 = sphi 0, %s28
      %s42 = sphi 0, %s44
      %s45 = sphi 0, %s42
      %s46 = sphi 0, %s45
      %s62 = sphi 0, %s46
      %s66 = sphi 0, %s66
      %s68 = sphi 0, %s66
      %s69 = sphi 0, %s68
      %s83 = sphi 0, %s69
      %s87 = sphi 0, %s87
      %s89 = sphi 0, %s87
      %s90 = sphi 0, %s89
      %s104 = sphi 0, %s90
      %s108 = sphi 0, %s108
      %s110 = sphi 0, %s108
      %s111 = sphi 0, %s110
      %s125 = sphi 0, %s111
      %s129 = sphi 0, %s129
      %s131 = sphi 0, %s129
      %s132 = sphi 0, %s131
      %s146 = sphi 0, %s132
      %s150 = sphi 0, %s150
      %s152 = sphi 0, %s150
      %s153 = sphi 0, %s152
      %s167 = sphi 0, %s153
      %s171 = sphi 0, %s171
      %s173 = sphi 0, %s171
      %s174 = sphi 0, %s173
      %s188 = sphi 0, %s174
      %s194 = sphi 0, %s196
      %s197 = sphi 0, %s194
      %s198 = sphi 0, %s197
      %s214 = sphi 0, %s198
      %s220 = sphi 0, %s222
      %s223 = sphi 0, %s220
      %s224 = sphi 0, %s223
      %s240 = sphi 0, %s224
    $region4: #{emrnn_forward.1} parent=1 // loop_header_branch
      %21 = sbr.rel (%p19) target = $region8
    $region5: #{emrnn_forward.1} parent=1 // loop_body
      %s23 = ssub.s32 %s18, 1
      %s24 = ssub.s32 %s18, 2
      %s31 = sadd.s32 1, %s26
      %p32 = scmp.ge.s32.totalorder %s31, 2
      %s33 = scalar_select %p32, 0, %s31
      %s34 = sadd.s32 1, %s25
      %s35 = scalar_select %p32, %s34, %s25
      %p36 = scmp.ge.s32.totalorder %s35, 2
      %s37 = scalar_select %p36, 0, %s35
      %s38 = ssub.s32 %s26, %s33
      %s39 = ssub.s32 %s25, %s37
      %s40 = sor.u32 %s38, %s39
      %p41 = scmp.eq.s32.totalorder %s40, 0
      %s43 = sadd.s32 %s42, 1
      %s44 = scalar_select %p41, %s42, %s43
      %p47 = pneg %p41
      %p48 = scmp.eq.s32.totalorder %s18, 3
      %p49 = por %p47, %p48
      %p50 = scmp.ne.s32.totalorder %s42, %s45
      %p51 = scmp.eq.s32.totalorder %s18, 0
      %p52 = por %p50, %p51
      %p53 = scmp.ne.s32.totalorder %s42, %s45
      %p54 = scmp.eq.s32.totalorder %s23, 3
      %p55 = por %p53, %p54
      %p56 = scmp.ne.s32.totalorder %s45, %s46
      %p57 = scmp.eq.s32.totalorder %s23, 0
      %p58 = por %p56, %p57
      %p59 = scmp.ne.s32.totalorder %s45, %s46
      %p60 = scmp.eq.s32.totalorder %s24, 3
      %p61 = por %p59, %p60
      %p63 = scmp.ne.s32.totalorder %s46, %s62
      %p64 = scmp.eq.s32.totalorder %s24, 0
      %p65 = por %p63, %p64
      %s67 = sadd.s32 %s66, 1
      %p70 = scmp.eq.s32.totalorder %s18, 3
      %p71 = scmp.ne.s32.totalorder %s66, %s68
      %p72 = scmp.eq.s32.totalorder %s18, 0
      %p73 = por %p71, %p72
      %p74 = scmp.ne.s32.totalorder %s66, %s68
      %p75 = scmp.eq.s32.totalorder %s23, 3
      %p76 = por %p74, %p75
      %p77 = scmp.ne.s32.totalorder %s68, %s69
      %p78 = scmp.eq.s32.totalorder %s23, 0
      %p79 = por %p77, %p78
      %p80 = scmp.ne.s32.totalorder %s68, %s69
      %p81 = scmp.eq.s32.totalorder %s24, 3
      %p82 = por %p80, %p81
      %p84 = scmp.ne.s32.totalorder %s69, %s83
      %p85 = scmp.eq.s32.totalorder %s24, 0
      %p86 = por %p84, %p85
      %s88 = sadd.s32 %s87, 1
      %p91 = scmp.eq.s32.totalorder %s18, 3
      %p92 = scmp.ne.s32.totalorder %s87, %s89
      %p93 = scmp.eq.s32.totalorder %s18, 0
      %p94 = por %p92, %p93
      %p95 = scmp.ne.s32.totalorder %s87, %s89
      %p96 = scmp.eq.s32.totalorder %s23, 3
      %p97 = por %p95, %p96
      %p98 = scmp.ne.s32.totalorder %s89, %s90
      %p99 = scmp.eq.s32.totalorder %s23, 0
      %p100 = por %p98, %p99
      %p101 = scmp.ne.s32.totalorder %s89, %s90
      %p102 = scmp.eq.s32.totalorder %s24, 3
      %p103 = por %p101, %p102
      %p105 = scmp.ne.s32.totalorder %s90, %s104
      %p106 = scmp.eq.s32.totalorder %s24, 0
      %p107 = por %p105, %p106
      %s109 = sadd.s32 %s108, 1
      %p112 = scmp.eq.s32.totalorder %s18, 3
      %p113 = scmp.ne.s32.totalorder %s108, %s110
      %p114 = scmp.eq.s32.totalorder %s18, 0
      %p115 = por %p113, %p114
      %p116 = scmp.ne.s32.totalorder %s108, %s110
      %p117 = scmp.eq.s32.totalorder %s23, 3
      %p118 = por %p116, %p117
      %p119 = scmp.ne.s32.totalorder %s110, %s111
      %p120 = scmp.eq.s32.totalorder %s23, 0
      %p121 = por %p119, %p120
      %p122 = scmp.ne.s32.totalorder %s110, %s111
      %p123 = scmp.eq.s32.totalorder %s24, 3
      %p124 = por %p122, %p123
      %p126 = scmp.ne.s32.totalorder %s111, %s125
      %p127 = scmp.eq.s32.totalorder %s24, 0
      %p128 = por %p126, %p127
      %s130 = sadd.s32 %s129, 1
      %p133 = scmp.eq.s32.totalorder %s18, 3
      %p134 = scmp.ne.s32.totalorder %s129, %s131
      %p135 = scmp.eq.s32.totalorder %s18, 0
      %p136 = por %p134, %p135
      %p137 = scmp.ne.s32.totalorder %s129, %s131
      %p138 = scmp.eq.s32.totalorder %s23, 3
      %p139 = por %p137, %p138
      %p140 = scmp.ne.s32.totalorder %s131, %s132
      %p141 = scmp.eq.s32.totalorder %s23, 0
      %p142 = por %p140, %p141
      %p143 = scmp.ne.s32.totalorder %s131, %s132
      %p144 = scmp.eq.s32.totalorder %s24, 3
      %p145 = por %p143, %p144
      %p147 = scmp.ne.s32.totalorder %s132, %s146
      %p148 = scmp.eq.s32.totalorder %s24, 0
      %p149 = por %p147, %p148
      %s151 = sadd.s32 %s150, 1
      %p154 = scmp.eq.s32.totalorder %s18, 3
      %p155 = scmp.ne.s32.totalorder %s150, %s152
      %p156 = scmp.eq.s32.totalorder %s18, 0
      %p157 = por %p155, %p156
      %p158 = scmp.ne.s32.totalorder %s150, %s152
      %p159 = scmp.eq.s32.totalorder %s23, 3
      %p160 = por %p158, %p159
      %p161 = scmp.ne.s32.totalorder %s152, %s153
      %p162 = scmp.eq.s32.totalorder %s23, 0
      %p163 = por %p161, %p162
      %p164 = scmp.ne.s32.totalorder %s152, %s153
      %p165 = scmp.eq.s32.totalorder %s24, 3
      %p166 = por %p164, %p165
      %p168 = scmp.ne.s32.totalorder %s153, %s167
      %p169 = scmp.eq.s32.totalorder %s24, 0
      %p170 = por %p168, %p169
      %s172 = sadd.s32 %s171, 1
      %p175 = scmp.eq.s32.totalorder %s18, 3
      %p176 = scmp.ne.s32.totalorder %s171, %s173
      %p177 = scmp.eq.s32.totalorder %s18, 0
      %p178 = por %p176, %p177
      %p179 = scmp.ne.s32.totalorder %s171, %s173
      %p180 = scmp.eq.s32.totalorder %s23, 3
      %p181 = por %p179, %p180
      %p182 = scmp.ne.s32.totalorder %s173, %s174
      %p183 = scmp.eq.s32.totalorder %s23, 0
      %p184 = por %p182, %p183
      %p185 = scmp.ne.s32.totalorder %s173, %s174
      %p186 = scmp.eq.s32.totalorder %s24, 3
      %p187 = por %p185, %p186
      %p189 = scmp.ne.s32.totalorder %s174, %s188
      %p190 = scmp.eq.s32.totalorder %s24, 0
      %p191 = por %p189, %p190
      %s192 = ssub.s32 %s25, %s37
      %p193 = scmp.eq.s32.totalorder %s192, 0
      %s195 = sadd.s32 %s194, 1
      %s196 = scalar_select %p193, %s194, %s195
      %p199 = pneg %p193
      %p200 = scmp.eq.s32.totalorder %s18, 3
      %p201 = por %p199, %p200
      %p202 = scmp.ne.s32.totalorder %s194, %s197
      %p203 = scmp.eq.s32.totalorder %s18, 0
      %p204 = por %p202, %p203
      %p205 = scmp.ne.s32.totalorder %s194, %s197
      %p206 = scmp.eq.s32.totalorder %s23, 3
      %p207 = por %p205, %p206
      %p208 = scmp.ne.s32.totalorder %s197, %s198
      %p209 = scmp.eq.s32.totalorder %s23, 0
      %p210 = por %p208, %p209
      %p211 = scmp.ne.s32.totalorder %s197, %s198
      %p212 = scmp.eq.s32.totalorder %s24, 3
      %p213 = por %p211, %p212
      %p215 = scmp.ne.s32.totalorder %s198, %s214
      %p216 = scmp.eq.s32.totalorder %s24, 0
      %p217 = por %p215, %p216
      %s218 = ssub.s32 %s25, %s37
      %p219 = scmp.eq.s32.totalorder %s218, 0
      %s221 = sadd.s32 %s220, 1
      %s222 = scalar_select %p219, %s220, %s221
      %p225 = pneg %p219
      %p226 = scmp.eq.s32.totalorder %s18, 3
      %p227 = por %p225, %p226
      %p228 = scmp.ne.s32.totalorder %s220, %s223
      %p229 = scmp.eq.s32.totalorder %s18, 0
      %p230 = por %p228, %p229
      %p231 = scmp.ne.s32.totalorder %s220, %s223
      %p232 = scmp.eq.s32.totalorder %s23, 3
      %p233 = por %p231, %p232
      %p234 = scmp.ne.s32.totalorder %s223, %s224
      %p235 = scmp.eq.s32.totalorder %s23, 0
      %p236 = por %p234, %p235
      %p237 = scmp.ne.s32.totalorder %s223, %s224
      %p238 = scmp.eq.s32.totalorder %s24, 3
      %p239 = por %p237, %p238
      %p241 = scmp.ne.s32.totalorder %s224, %s240
      %p242 = scmp.eq.s32.totalorder %s24, 0
      %p243 = por %p241, %p242
      %p244 = scmp.le.s32.totalorder 1, %s18
      %p245 = scmp.lt.s32.totalorder %s18, 5
      %p246 = pnand %p244, %p245
      %p247 = pneg %p246
      // Predicated region
      $region9: #{emrnn_forward.1} parent=5 // pred_check
        _
      $region10: #{emrnn_forward.1} parent=5 // pred_check_branch
        %249 = sbr.rel (%p246) target = $region12
      $region11: #{emrnn_forward.1} parent=5 // pred_region
        %s250 = ssub.s32 %s18, 1
        // Predicated region
        $region13: #{emrnn_forward.1} parent=11 // pred_check
          %p251 = pneg %p79
        $region14: #{emrnn_forward.1} parent=11 // pred_check_branch
          %253 = sbr.rel (%p251) target = $region16
        $region15: #{emrnn_forward.1} parent=11 // pred_region
          _
        $region16: #{emrnn_forward.1} parent=11 // pred_fallthru
          _
        // Predicated region
        $region17: #{emrnn_forward.1} parent=11 // pred_check
          %p254 = pneg %p100
        $region18: #{emrnn_forward.1} parent=11 // pred_check_branch
          %256 = sbr.rel (%p254) target = $region20
        $region19: #{emrnn_forward.1} parent=11 // pred_region
          _
        $region20: #{emrnn_forward.1} parent=11 // pred_fallthru
          _
        // Predicated region
        $region21: #{emrnn_forward.1} parent=11 // pred_check
          %p257 = pneg %p121
        $region22: #{emrnn_forward.1} parent=11 // pred_check_branch
          %259 = sbr.rel (%p257) target = $region24
        $region23: #{emrnn_forward.1} parent=11 // pred_region
          _
        $region24: #{emrnn_forward.1} parent=11 // pred_fallthru
          _
        // Predicated region
        $region25: #{emrnn_forward.1} parent=11 // pred_check
          %p260 = pneg %p142
        $region26: #{emrnn_forward.1} parent=11 // pred_check_branch
          %262 = sbr.rel (%p260) target = $region28
        $region27: #{emrnn_forward.1} parent=11 // pred_region
          _
        $region28: #{emrnn_forward.1} parent=11 // pred_fallthru
          _
        // Predicated region
        $region29: #{emrnn_forward.1} parent=11 // pred_check
          %p263 = pneg %p163
        $region30: #{emrnn_forward.1} parent=11 // pred_check_branch
          %265 = sbr.rel (%p263) target = $region32
        $region31: #{emrnn_forward.1} parent=11 // pred_region
          _
        $region32: #{emrnn_forward.1} parent=11 // pred_fallthru
          _
        // Predicated region
        $region33: #{emrnn_forward.1} parent=11 // pred_check
          %p266 = pneg %p184
        $region34: #{emrnn_forward.1} parent=11 // pred_check_branch
          %268 = sbr.rel (%p266) target = $region36
        $region35: #{emrnn_forward.1} parent=11 // pred_region
          _
        $region36: #{emrnn_forward.1} parent=11 // pred_fallthru
          _
      $region12: #{emrnn_forward.1} parent=5 // pred_fallthru
        _
      %p269 = scmp.lt.s32.totalorder %s18, 4
      // Predicated region
      $region37: #{emrnn_forward.1} parent=5 // pred_check
        %p270 = pneg %p269
      $region38: #{emrnn_forward.1} parent=5 // pred_check_branch
        %272 = sbr.rel (%p270) target = $region40
      $region39: #{emrnn_forward.1} parent=5 // pred_region
        // Predicated region
        $region41: #{emrnn_forward.1} parent=39 // pred_check
          %p273 = pneg %p52
        $region42: #{emrnn_forward.1} parent=39 // pred_check_branch
          %275 = sbr.rel (%p273) target = $region44
        $region43: #{emrnn_forward.1} parent=39 // pred_region
          %s276 = sand.u32 %s42, 1
          %s277 = sand.u32 %s42, 1
          %s278 = smul.addr %s277, 32
          %s279 = scalar_lea.vmem [#allocation4], %s278
          %s280 = smul.u32 4, %s26
          %s281 = smul.u32 2, %s25
          %s282 = smul.addr %s280, 4
          %s283 = sadd.s32 %s281, %s282
          %s284 = smul.addr %s283, 4
          %s285 = scalar_lea.vmem %s0, %s284
          // Predicated region
          $region45: #{emrnn_forward.1} parent=43 // pred_check
            _
          $region46: #{emrnn_forward.1} parent=43 // pred_check_branch
            %287 = sbr.rel (0) target = $region48
          $region47: #{emrnn_forward.1} parent=43 // pred_region
            // Predicated region
            $region49: #{emrnn_forward.1} parent=47 // pred_check
              _
            $region50: #{emrnn_forward.1} parent=47 // pred_check_branch
              %289 = sbr.rel target = $region52
            $region51: #{emrnn_forward.1} parent=47 // pred_region
              // Predicated region
              $region64: #{emrnn_forward.1} parent=51 // pred_check
                _
              $region65: #{emrnn_forward.1} parent=51 // pred_check_branch
                %318 = sbr.rel (0) target = $region67
              $region66: #{emrnn_forward.1} parent=51 // pred_region
                loop: start=0, step=1, limit=1
                $region68: #{emrnn_forward.1} parent=66 // loop_pre_header
                  _
                $region69: #{emrnn_forward.1} parent=66 // loop_header
                  %s320 = sphi 0, %s324
                  %p321 = scmp.ge.s32.totalorder %s320, 1
                  %s325 = sphi %s285, %s285
                  %s326 = sphi %s279, %s279
                $region70: #{emrnn_forward.1} parent=66 // loop_header_branch
                  %323 = sbr.rel (%p321) target = $region74
                $region71: #{emrnn_forward.1} parent=66 // loop_body
                  _
                $region72: #{emrnn_forward.1} parent=66 // loop_footer
                  %s324 = sadd.s32 1, %s320
                $region73: #{emrnn_forward.1} parent=66 // loop_footer_branch
                  %319 = sbr.rel target = $region69
                $region74: #{emrnn_forward.1} parent=66 // loop_exit
                  _
                loop: start=0, step=1, limit=1
                $region75: #{emrnn_forward.1} parent=66 // loop_pre_header
                  _
                $region76: #{emrnn_forward.1} parent=66 // loop_header
                  %s329 = sphi 0, %s333
                  %p330 = scmp.ge.s32.totalorder %s329, 1
                  %s334 = sphi %s285, %s285
                  %s335 = sphi %s279, %s279
                $region77: #{emrnn_forward.1} parent=66 // loop_header_branch
                  %332 = sbr.rel (%p330) target = $region81
                $region78: #{emrnn_forward.1} parent=66 // loop_body
                  %v336 = vld [vmem:[%s334] sm:$0xf]
                  %337 = vst [vmem:[%s335] sm:$0xf] %v336
                  %v338 = vld [vmem:[%s334 + $0x4] sm:$0xf]
                  %339 = vst [vmem:[%s335 + $0x4] sm:$0xf] %v338
                  %v340 = vld [vmem:[%s334 + $0x10] sm:$0xf]
                  %341 = vst [vmem:[%s335 + $0x8] sm:$0xf] %v340
                  %v342 = vld [vmem:[%s334 + $0x14] sm:$0xf]
                  %343 = vst [vmem:[%s335 + $0xc] sm:$0xf] %v342
                  %v344 = vld [vmem:[%s334 + $0x20] sm:$0xf]
                  %345 = vst [vmem:[%s335 + $0x10] sm:$0xf] %v344
                  %v346 = vld [vmem:[%s334 + $0x24] sm:$0xf]
                  %347 = vst [vmem:[%s335 + $0x14] sm:$0xf] %v346
                  %v348 = vld [vmem:[%s334 + $0x30] sm:$0xf]
                  %349 = vst [vmem:[%s335 + $0x18] sm:$0xf] %v348
                  %v350 = vld [vmem:[%s334 + $0x34] sm:$0xf]
                  %351 = vst [vmem:[%s335 + $0x1c] sm:$0xf] %v350
                $region79: #{emrnn_forward.1} parent=66 // loop_footer
                  %s333 = sadd.s32 1, %s329
                $region80: #{emrnn_forward.1} parent=66 // loop_footer_branch
                  %328 = sbr.rel target = $region76
                $region81: #{emrnn_forward.1} parent=66 // loop_exit
                  _
              $region67: #{emrnn_forward.1} parent=51 // pred_fallthru
                _
            $region52: #{emrnn_forward.1} parent=47 // pred_fallthru
              _
            // Predicated region
            $region53: #{emrnn_forward.1} parent=47 // pred_check
              _
            $region54: #{emrnn_forward.1} parent=47 // pred_check_branch
              %291 = sbr.rel (0) target = $region56
            $region55: #{emrnn_forward.1} parent=47 // pred_region
              loop: start=0, step=1, limit=1
              $region57: #{emrnn_forward.1} parent=55 // loop_pre_header
                _
              $region58: #{emrnn_forward.1} parent=55 // loop_header
                %s294 = sphi 0, %s298
                %p295 = scmp.ge.s32.totalorder %s294, 1
                %s299 = sphi %s285, %s285
                %s300 = sphi %s279, %s279
              $region59: #{emrnn_forward.1} parent=55 // loop_header_branch
                %297 = sbr.rel (%p295) target = $region63
              $region60: #{emrnn_forward.1} parent=55 // loop_body
                %v301 = vld [vmem:[%s299] sm:$0xf]
                %302 = vst [vmem:[%s300] sm:$0xf] %v301
                %v303 = vld [vmem:[%s299 + $0x4] sm:$0xf]
                %304 = vst [vmem:[%s300 + $0x4] sm:$0xf] %v303
                %v305 = vld [vmem:[%s299 + $0x10] sm:$0xf]
                %306 = vst [vmem:[%s300 + $0x8] sm:$0xf] %v305
                %v307 = vld [vmem:[%s299 + $0x14] sm:$0xf]
                %308 = vst [vmem:[%s300 + $0xc] sm:$0xf] %v307
                %v309 = vld [vmem:[%s299 + $0x20] sm:$0xf]
                %310 = vst [vmem:[%s300 + $0x10] sm:$0xf] %v309
                %v311 = vld [vmem:[%s299 + $0x24] sm:$0xf]
                %312 = vst [vmem:[%s300 + $0x14] sm:$0xf] %v311
                %v313 = vld [vmem:[%s299 + $0x30] sm:$0xf]
                %314 = vst [vmem:[%s300 + $0x18] sm:$0xf] %v313
                %v315 = vld [vmem:[%s299 + $0x34] sm:$0xf]
                %316 = vst [vmem:[%s300 + $0x1c] sm:$0xf] %v315
              $region61: #{emrnn_forward.1} parent=55 // loop_footer
                %s298 = sadd.s32 1, %s294
              $region62: #{emrnn_forward.1} parent=55 // loop_footer_branch
                %293 = sbr.rel target = $region58
              $region63: #{emrnn_forward.1} parent=55 // loop_exit
                _
            $region56: #{emrnn_forward.1} parent=47 // pred_fallthru
              _
          $region48: #{emrnn_forward.1} parent=43 // pred_fallthru
            _
          %352 = vnop
        $region44: #{emrnn_forward.1} parent=39 // pred_fallthru
          _
      $region40: #{emrnn_forward.1} parent=5 // pred_fallthru
        _
      %p353 = scmp.le.s32.totalorder 1, %s18
      %p354 = scmp.lt.s32.totalorder %s18, 5
      %p355 = pnand %p353, %p354
      %p356 = pneg %p355
      // Predicated region
      $region82: #{emrnn_forward.1} parent=5 // pred_check
        _
      $region83: #{emrnn_forward.1} parent=5 // pred_check_branch
        %358 = sbr.rel (%p355) target = $region85
      $region84: #{emrnn_forward.1} parent=5 // pred_region
        %s359 = ssub.s32 %s18, 1
        %s360 = sand.u32 %s45, 1
        %s361 = sand.u32 %s45, 1
        %s362 = smul.addr %s361, 32
        %s363 = scalar_lea.vmem [#allocation4], %s362
        // Predicated region
        $region86: #{emrnn_forward.1} parent=84 // pred_check
          %p364 = pneg %p58
        $region87: #{emrnn_forward.1} parent=84 // pred_check_branch
          %366 = sbr.rel (%p364) target = $region89
        $region88: #{emrnn_forward.1} parent=84 // pred_region
          _
        $region89: #{emrnn_forward.1} parent=84 // pred_fallthru
          _
        %s367 = sand.u32 %s45, 1
        %s368 = sand.u32 %s45, 1
        %s369 = smul.addr %s368, 32
        %s370 = scalar_lea.vmem [#allocation4], %s369
        %p371 = pneg %p58
        %p372 = pneg %p55
        %p373 = pneg %p79
        %p374 = pneg %p76
        %p375 = pneg %p100
        %p376 = pneg %p97
        %p377 = pneg %p121
        %p378 = pneg %p118
        %p379 = pneg %p142
        %p380 = pneg %p139
        %p381 = pneg %p163
        %p382 = pneg %p160
        %p383 = pneg %p184
        %p384 = pneg %p181
        %p385 = pneg %p210
        %p386 = pneg %p207
        %s387 = smul.u32 2, %s27
        %p388 = scmp.lt.s32.totalorder %s387, 3
        %s389 = scalar_select %p388, %s387, 3
        %s390 = smul.addr %s389, 8
        %s391 = scalar_lea.vmem %s7, %s390
        %p392 = pneg %p236
        %p393 = pneg %p233
        %s394 = sand.u32 %s223, 1
        %s395 = scalar_lea.sflag [#allocation6], %s394
        %s396 = sand.u32 %s223, 1
        %s397 = smul.addr %s396, 32
        %s398 = scalar_lea.vmem [#allocation5], %s397
        %s399 = smul.u32 4, %s28
        %s400 = smul.u32 2, %s27
        %s401 = smul.u32 2, %s27
        %p402 = scmp.lt.s32.totalorder %s401, 3
        %s403 = scalar_select %p402, %s401, 3
        %s404 = smul.addr %s403, 8
        %s405 = scalar_lea.vmem %s7, %s404
        %s406 = smul.u32 2, %s27
        %s407 = smul.u32 2, %s27
        %p409 = scmp.eq.s32.totalorder %s28, 0
        // Predicated region
        $region90: #{emrnn_forward.1} parent=84 // pred_check
          %p410 = pneg %p409
        $region91: #{emrnn_forward.1} parent=84 // pred_check_branch
          %412 = sbr.rel (%p410) target = $region93
        $region92: #{emrnn_forward.1} parent=84 // pred_region
          %413 = vst [vmem:[#allocation2] sm:$0xff] 0.0
          %414 = vst [vmem:[#allocation2 + $0x8] sm:$0xff] 0.0
          %415 = vst [vmem:[#allocation3] sm:$0xff] 0.0
          %416 = vst [vmem:[#allocation3 + $0x8] sm:$0xff] 0.0
        $region93: #{emrnn_forward.1} parent=84 // pred_fallthru
          _
        %v417 = vld [vmem:[%s2] sm:$0x1]
        %v419 = vlaneseq
        %v420 = vshrl.u32 %v419, 7
        %v421 = vsub.s32 0, %v420
        %v422 = vrot.slane %v417, %v421
        %v424 = vld [vmem:[%s4] sm:$0x1]
        %v426 = vlaneseq
        %v427 = vshrl.u32 %v426, 7
        %v428 = vsub.s32 0, %v427
        %v429 = vrot.slane %v424, %v428
        %v431 = vld [vmem:[#allocation2] sm:$0xff]
        %v432 = vld [vmem:[#allocation2 + $0x8] sm:$0xff]
        %v433 = vld [vmem:[#allocation3] sm:$0xff]
        %v434 = vld [vmem:[#allocation3 + $0x8] sm:$0xff]
        %v435 = vld [vmem:[%s363] sm:$0xf]
        %v436 = vld [vmem:[%s363 + $0x4] sm:$0xf]
        %v437 = vunpack.c.l.bf16 %v435
        %v438 = vunpack.c.l.bf16 %v436
        %v439 = vpack.c.bf16 %v438, %v437
        %v440 = vpack.c.bf16 %v432, %v431
        %v441 = vld [vmem:[%s1] sm:$0xf]
        %v442 = vld [vmem:[%s1 + $0x4] sm:$0xf]
        %v443 = vld [vmem:[%s1 + $0x8] sm:$0xf]
        %v444 = vld [vmem:[%s1 + $0xc] sm:$0xf]
        %v445 = vld [vmem:[%s1 + $0x10] sm:$0xf]
        %v446 = vld [vmem:[%s1 + $0x14] sm:$0xf]
        %v447 = vld [vmem:[%s1 + $0x18] sm:$0xf]
        %v448 = vld [vmem:[%s1 + $0x1c] sm:$0xf]
        %v449 = vld [vmem:[%s1 + $0x20] sm:$0xf]
        %v450 = vld [vmem:[%s1 + $0x24] sm:$0xf]
        %v451 = vld [vmem:[%s1 + $0x28] sm:$0xf]
        %v452 = vld [vmem:[%s1 + $0x2c] sm:$0xf]
        %v453 = vld [vmem:[%s1 + $0x30] sm:$0xf]
        %v454 = vld [vmem:[%s1 + $0x34] sm:$0xf]
        %v455 = vld [vmem:[%s1 + $0x38] sm:$0xf]
        %v456 = vld [vmem:[%s1 + $0x3c] sm:$0xf]
        %v457 = vld [vmem:[%s1 + $0x40] sm:$0xf]
        %v458 = vld [vmem:[%s1 + $0x44] sm:$0xf]
        %v459 = vld [vmem:[%s1 + $0x48] sm:$0xf]
        %v460 = vld [vmem:[%s1 + $0x4c] sm:$0xf]
        %v461 = vld [vmem:[%s1 + $0x50] sm:$0xf]
        %v462 = vld [vmem:[%s1 + $0x54] sm:$0xf]
        %v463 = vld [vmem:[%s1 + $0x58] sm:$0xf]
        %v464 = vld [vmem:[%s1 + $0x5c] sm:$0xf]
        %v465 = vld [vmem:[%s1 + $0x60] sm:$0xf]
        %v466 = vld [vmem:[%s1 + $0x64] sm:$0xf]
        %v467 = vld [vmem:[%s1 + $0x68] sm:$0xf]
        %v468 = vld [vmem:[%s1 + $0x6c] sm:$0xf]
        %v469 = vld [vmem:[%s1 + $0x70] sm:$0xf]
        %v470 = vld [vmem:[%s1 + $0x74] sm:$0xf]
        %v471 = vld [vmem:[%s1 + $0x78] sm:$0xf]
        %v472 = vld [vmem:[%s1 + $0x7c] sm:$0xf]
        %v505 = vunpack.c.l.b16 %v441
        %v506 = vunpack.c.l.b16 %v442
        %v507 = vunpack.c.l.b16 %v443
        %v508 = vunpack.c.l.b16 %v444
        %v509 = vunpack.c.l.b16 %v445
        %v510 = vunpack.c.l.b16 %v446
        %v511 = vunpack.c.l.b16 %v447
        %v512 = vunpack.c.l.b16 %v448
        %v513 = vunpack.c.l.b16 %v449
        %v514 = vunpack.c.l.b16 %v450
        %v515 = vunpack.c.l.b16 %v451
        %v516 = vunpack.c.l.b16 %v452
        %v517 = vunpack.c.l.b16 %v453
        %v518 = vunpack.c.l.b16 %v454
        %v519 = vunpack.c.l.b16 %v455
        %v520 = vunpack.c.l.b16 %v456
        %v521 = vunpack.c.l.b16 %v457
        %v522 = vunpack.c.l.b16 %v458
        %v523 = vunpack.c.l.b16 %v459
        %v524 = vunpack.c.l.b16 %v460
        %v525 = vunpack.c.l.b16 %v461
        %v526 = vunpack.c.l.b16 %v462
        %v527 = vunpack.c.l.b16 %v463
        %v528 = vunpack.c.l.b16 %v464
        %v529 = vunpack.c.l.b16 %v465
        %v530 = vunpack.c.l.b16 %v466
        %v531 = vunpack.c.l.b16 %v467
        %v532 = vunpack.c.l.b16 %v468
        %v533 = vunpack.c.l.b16 %v469
        %v534 = vunpack.c.l.b16 %v470
        %v535 = vunpack.c.l.b16 %v471
        %v536 = vunpack.c.l.b16 %v472
        %v537 = vpack.c.b16 %v506, %v505
        %v538 = vpack.c.b16 %v508, %v507
        %v539 = vpack.c.b16 %v510, %v509
        %v540 = vpack.c.b16 %v512, %v511
        %v541 = vpack.c.b16 %v514, %v513
        %v542 = vpack.c.b16 %v516, %v515
        %v543 = vpack.c.b16 %v518, %v517
        %v544 = vpack.c.b16 %v520, %v519
        %v545 = vpack.c.b16 %v522, %v521
        %v546 = vpack.c.b16 %v524, %v523
        %v547 = vpack.c.b16 %v526, %v525
        %v548 = vpack.c.b16 %v528, %v527
        %v549 = vpack.c.b16 %v530, %v529
        %v550 = vpack.c.b16 %v532, %v531
        %v551 = vpack.c.b16 %v534, %v533
        %v552 = vpack.c.b16 %v536, %v535
        %569 = vmatprep.subr.bf16.mxu0 0
        %570 = vmatpush1.bf16.msra.mxu0 %v537
        %571 = vmatprep.subr.bf16.mxu0 0
        %572 = vmatpush1.bf16.msra.mxu0 %v538
        %573 = vmatprep.subr.bf16.mxu0 0
        %574 = vmatpush1.bf16.msra.mxu0 %v539
        %575 = vmatprep.subr.bf16.mxu0 0
        %576 = vmatpush1.bf16.msra.mxu0 %v540
        %577 = vmatprep.subr.bf16.mxu0 0
        %578 = vmatpush1.bf16.msra.mxu0 %v541
        %579 = vmatprep.subr.bf16.mxu0 0
        %580 = vmatpush1.bf16.msra.mxu0 %v542
        %581 = vmatprep.subr.bf16.mxu0 0
        %582 = vmatpush1.bf16.msra.mxu0 %v543
        %583 = vmatprep.subr.bf16.mxu0 0
        %584 = vmatpush1.bf16.msra.mxu0 %v544
        %585 = vmatprep.subr.bf16.mxu0 0
        %586 = vmatpush1.bf16.msra.mxu0 %v545
        %587 = vmatprep.subr.bf16.mxu0 0
        %588 = vmatpush1.bf16.msra.mxu0 %v546
        %589 = vmatprep.subr.bf16.mxu0 0
        %590 = vmatpush1.bf16.msra.mxu0 %v547
        %591 = vmatprep.subr.bf16.mxu0 0
        %592 = vmatpush1.bf16.msra.mxu0 %v548
        %593 = vmatprep.subr.bf16.mxu0 0
        %594 = vmatpush1.bf16.msra.mxu0 %v549
        %595 = vmatprep.subr.bf16.mxu0 0
        %596 = vmatpush1.bf16.msra.mxu0 %v550
        %597 = vmatprep.subr.bf16.mxu0 0
        %598 = vmatpush1.bf16.msra.mxu0 %v551
        %599 = vmatprep.subr.bf16.mxu0 0
        %600 = vmatpush1.bf16.msra.mxu0 %v552
        %601 = vmatprep.mubr.bf16.mxu0 %v440
        %602 = vmatmul.mubr.bf16.gmra.mrb[0].mxu0 %v439
        %v603 = vpop.f32.mrb[0].mxu0
        %v604 = vadd.f32 %v422, %v603
        %v605 = vpop.f32.mrb[0].mxu0
        %v606 = vpop.f32.mrb[0].mxu0
        %v607 = vadd.f32 %v422, %v606
        %v608 = vpop.f32.mrb[0].mxu0
        %609 = vdwg.mxu0
        %v610 = vmax.f32 %v604, 0.0
        %v611 = vmax.f32 %v607, 0.0
        %v612 = vpack.c.bf16 %v611, %v610
        %v613 = vpack.c.bf16 %v434, %v433
        %v614 = vld [vmem:[%s3] sm:$0xf]
        %v615 = vld [vmem:[%s3 + $0x4] sm:$0xf]
        %v616 = vld [vmem:[%s3 + $0x8] sm:$0xf]
        %v617 = vld [vmem:[%s3 + $0xc] sm:$0xf]
        %v618 = vld [vmem:[%s3 + $0x10] sm:$0xf]
        %v619 = vld [vmem:[%s3 + $0x14] sm:$0xf]
        %v620 = vld [vmem:[%s3 + $0x18] sm:$0xf]
        %v621 = vld [vmem:[%s3 + $0x1c] sm:$0xf]
        %v622 = vld [vmem:[%s3 + $0x20] sm:$0xf]
        %v623 = vld [vmem:[%s3 + $0x24] sm:$0xf]
        %v624 = vld [vmem:[%s3 + $0x28] sm:$0xf]
        %v625 = vld [vmem:[%s3 + $0x2c] sm:$0xf]
        %v626 = vld [vmem:[%s3 + $0x30] sm:$0xf]
        %v627 = vld [vmem:[%s3 + $0x34] sm:$0xf]
        %v628 = vld [vmem:[%s3 + $0x38] sm:$0xf]
        %v629 = vld [vmem:[%s3 + $0x3c] sm:$0xf]
        %v630 = vld [vmem:[%s3 + $0x40] sm:$0xf]
        %v631 = vld [vmem:[%s3 + $0x44] sm:$0xf]
        %v632 = vld [vmem:[%s3 + $0x48] sm:$0xf]
        %v633 = vld [vmem:[%s3 + $0x4c] sm:$0xf]
        %v634 = vld [vmem:[%s3 + $0x50] sm:$0xf]
        %v635 = vld [vmem:[%s3 + $0x54] sm:$0xf]
        %v636 = vld [vmem:[%s3 + $0x58] sm:$0xf]
        %v637 = vld [vmem:[%s3 + $0x5c] sm:$0xf]
        %v638 = vld [vmem:[%s3 + $0x60] sm:$0xf]
        %v639 = vld [vmem:[%s3 + $0x64] sm:$0xf]
        %v640 = vld [vmem:[%s3 + $0x68] sm:$0xf]
        %v641 = vld [vmem:[%s3 + $0x6c] sm:$0xf]
        %v642 = vld [vmem:[%s3 + $0x70] sm:$0xf]
        %v643 = vld [vmem:[%s3 + $0x74] sm:$0xf]
        %v644 = vld [vmem:[%s3 + $0x78] sm:$0xf]
        %v645 = vld [vmem:[%s3 + $0x7c] sm:$0xf]
        %v678 = vunpack.c.l.b16 %v614
        %v679 = vunpack.c.l.b16 %v615
        %v680 = vunpack.c.l.b16 %v616
        %v681 = vunpack.c.l.b16 %v617
        %v682 = vunpack.c.l.b16 %v618
        %v683 = vunpack.c.l.b16 %v619
        %v684 = vunpack.c.l.b16 %v620
        %v685 = vunpack.c.l.b16 %v621
        %v686 = vunpack.c.l.b16 %v622
        %v687 = vunpack.c.l.b16 %v623
        %v688 = vunpack.c.l.b16 %v624
        %v689 = vunpack.c.l.b16 %v625
        %v690 = vunpack.c.l.b16 %v626
        %v691 = vunpack.c.l.b16 %v627
        %v692 = vunpack.c.l.b16 %v628
        %v693 = vunpack.c.l.b16 %v629
        %v694 = vunpack.c.l.b16 %v630
        %v695 = vunpack.c.l.b16 %v631
        %v696 = vunpack.c.l.b16 %v632
        %v697 = vunpack.c.l.b16 %v633
        %v698 = vunpack.c.l.b16 %v634
        %v699 = vunpack.c.l.b16 %v635
        %v700 = vunpack.c.l.b16 %v636
        %v701 = vunpack.c.l.b16 %v637
        %v702 = vunpack.c.l.b16 %v638
        %v703 = vunpack.c.l.b16 %v639
        %v704 = vunpack.c.l.b16 %v640
        %v705 = vunpack.c.l.b16 %v641
        %v706 = vunpack.c.l.b16 %v642
        %v707 = vunpack.c.l.b16 %v643
        %v708 = vunpack.c.l.b16 %v644
        %v709 = vunpack.c.l.b16 %v645
        %v710 = vpack.c.b16 %v679, %v678
        %v711 = vpack.c.b16 %v681, %v680
        %v712 = vpack.c.b16 %v683, %v682
        %v713 = vpack.c.b16 %v685, %v684
        %v714 = vpack.c.b16 %v687, %v686
        %v715 = vpack.c.b16 %v689, %v688
        %v716 = vpack.c.b16 %v691, %v690
        %v717 = vpack.c.b16 %v693, %v692
        %v718 = vpack.c.b16 %v695, %v694
        %v719 = vpack.c.b16 %v697, %v696
        %v720 = vpack.c.b16 %v699, %v698
        %v721 = vpack.c.b16 %v701, %v700
        %v722 = vpack.c.b16 %v703, %v702
        %v723 = vpack.c.b16 %v705, %v704
        %v724 = vpack.c.b16 %v707, %v706
        %v725 = vpack.c.b16 %v709, %v708
        %742 = vmatprep.subr.bf16.mxu0 0
        %743 = vmatpush1.bf16.msra.mxu0 %v710
        %744 = vmatprep.subr.bf16.mxu0 0
        %745 = vmatpush1.bf16.msra.mxu0 %v711
        %746 = vmatprep.subr.bf16.mxu0 0
        %747 = vmatpush1.bf16.msra.mxu0 %v712
        %748 = vmatprep.subr.bf16.mxu0 0
        %749 = vmatpush1.bf16.msra.mxu0 %v713
        %750 = vmatprep.subr.bf16.mxu0 0
        %751 = vmatpush1.bf16.msra.mxu0 %v714
        %752 = vmatprep.subr.bf16.mxu0 0
        %753 = vmatpush1.bf16.msra.mxu0 %v715
        %754 = vmatprep.subr.bf16.mxu0 0
        %755 = vmatpush1.bf16.msra.mxu0 %v716
        %756 = vmatprep.subr.bf16.mxu0 0
        %757 = vmatpush1.bf16.msra.mxu0 %v717
        %758 = vmatprep.subr.bf16.mxu0 0
        %759 = vmatpush1.bf16.msra.mxu0 %v718
        %760 = vmatprep.subr.bf16.mxu0 0
        %761 = vmatpush1.bf16.msra.mxu0 %v719
        %762 = vmatprep.subr.bf16.mxu0 0
        %763 = vmatpush1.bf16.msra.mxu0 %v720
        %764 = vmatprep.subr.bf16.mxu0 0
        %765 = vmatpush1.bf16.msra.mxu0 %v721
        %766 = vmatprep.subr.bf16.mxu0 0
        %767 = vmatpush1.bf16.msra.mxu0 %v722
        %768 = vmatprep.subr.bf16.mxu0 0
        %769 = vmatpush1.bf16.msra.mxu0 %v723
        %770 = vmatprep.subr.bf16.mxu0 0
        %771 = vmatpush1.bf16.msra.mxu0 %v724
        %772 = vmatprep.subr.bf16.mxu0 0
        %773 = vmatpush1.bf16.msra.mxu0 %v725
        %774 = vmatprep.mubr.bf16.mxu0 %v613
        %775 = vmatmul.mubr.bf16.gmra.mrb[0].mxu0 %v612
        %v776 = vpop.f32.mrb[0].mxu0
        %v777 = vadd.f32 %v429, %v776
        %v778 = vpop.f32.mrb[0].mxu0
        %v779 = vpop.f32.mrb[0].mxu0
        %v780 = vadd.f32 %v429, %v779
        %v781 = vpop.f32.mrb[0].mxu0
        %782 = vdwg.mxu0
        %v783 = vmax.f32 %v777, 0.0
        %v784 = vmax.f32 %v780, 0.0
        %s785 = scalar_lea.vmem %s363, 8 [#allocation4]
        %v786 = vld [vmem:[%s785] sm:$0xf]
        %v787 = vld [vmem:[%s785 + $0x4] sm:$0xf]
        %v788 = vunpack.c.l.bf16 %v786
        %v789 = vunpack.c.l.bf16 %v787
        %v790 = vpack.c.bf16 %v789, %v788
        %791 = vmatprep.subr.bf16.mxu0 0
        %792 = vmatpush1.bf16.msra.mxu0 %v537
        %793 = vmatprep.subr.bf16.mxu0 0
        %794 = vmatpush1.bf16.msra.mxu0 %v538
        %795 = vmatprep.subr.bf16.mxu0 0
        %796 = vmatpush1.bf16.msra.mxu0 %v539
        %797 = vmatprep.subr.bf16.mxu0 0
        %798 = vmatpush1.bf16.msra.mxu0 %v540
        %799 = vmatprep.subr.bf16.mxu0 0
        %800 = vmatpush1.bf16.msra.mxu0 %v541
        %801 = vmatprep.subr.bf16.mxu0 0
        %802 = vmatpush1.bf16.msra.mxu0 %v542
        %803 = vmatprep.subr.bf16.mxu0 0
        %804 = vmatpush1.bf16.msra.mxu0 %v543
        %805 = vmatprep.subr.bf16.mxu0 0
        %806 = vmatpush1.bf16.msra.mxu0 %v544
        %807 = vmatprep.subr.bf16.mxu0 0
        %808 = vmatpush1.bf16.msra.mxu0 %v545
        %809 = vmatprep.subr.bf16.mxu0 0
        %810 = vmatpush1.bf16.msra.mxu0 %v546
        %811 = vmatprep.subr.bf16.mxu0 0
        %812 = vmatpush1.bf16.msra.mxu0 %v547
        %813 = vmatprep.subr.bf16.mxu0 0
        %814 = vmatpush1.bf16.msra.mxu0 %v548
        %815 = vmatprep.subr.bf16.mxu0 0
        %816 = vmatpush1.bf16.msra.mxu0 %v549
        %817 = vmatprep.subr.bf16.mxu0 0
        %818 = vmatpush1.bf16.msra.mxu0 %v550
        %819 = vmatprep.subr.bf16.mxu0 0
        %820 = vmatpush1.bf16.msra.mxu0 %v551
        %821 = vmatprep.subr.bf16.mxu0 0
        %822 = vmatpush1.bf16.msra.mxu0 %v552
        %823 = vmatprep.mubr.bf16.mxu0 %v612
        %824 = vmatmul.mubr.bf16.gmra.mrb[0].mxu0 %v790
        %v825 = vpop.f32.mrb[0].mxu0
        %v826 = vadd.f32 %v422, %v825
        %v827 = vpop.f32.mrb[0].mxu0
        %v828 = vpop.f32.mrb[0].mxu0
        %v829 = vadd.f32 %v422, %v828
        %v830 = vpop.f32.mrb[0].mxu0
        %831 = vdwg.mxu0
        %v832 = vmax.f32 %v826, 0.0
        %v833 = vmax.f32 %v829, 0.0
        %v834 = vpack.c.bf16 %v833, %v832
        %v835 = vpack.c.bf16 %v784, %v783
        %836 = vmatprep.subr.bf16.mxu0 0
        %837 = vmatpush1.bf16.msra.mxu0 %v710
        %838 = vmatprep.subr.bf16.mxu0 0
        %839 = vmatpush1.bf16.msra.mxu0 %v711
        %840 = vmatprep.subr.bf16.mxu0 0
        %841 = vmatpush1.bf16.msra.mxu0 %v712
        %842 = vmatprep.subr.bf16.mxu0 0
        %843 = vmatpush1.bf16.msra.mxu0 %v713
        %844 = vmatprep.subr.bf16.mxu0 0
        %845 = vmatpush1.bf16.msra.mxu0 %v714
        %846 = vmatprep.subr.bf16.mxu0 0
        %847 = vmatpush1.bf16.msra.mxu0 %v715
        %848 = vmatprep.subr.bf16.mxu0 0
        %849 = vmatpush1.bf16.msra.mxu0 %v716
        %850 = vmatprep.subr.bf16.mxu0 0
        %851 = vmatpush1.bf16.msra.mxu0 %v717
        %852 = vmatprep.subr.bf16.mxu0 0
        %853 = vmatpush1.bf16.msra.mxu0 %v718
        %854 = vmatprep.subr.bf16.mxu0 0
        %855 = vmatpush1.bf16.msra.mxu0 %v719
        %856 = vmatprep.subr.bf16.mxu0 0
        %857 = vmatpush1.bf16.msra.mxu0 %v720
        %858 = vmatprep.subr.bf16.mxu0 0
        %859 = vmatpush1.bf16.msra.mxu0 %v721
        %860 = vmatprep.subr.bf16.mxu0 0
        %861 = vmatpush1.bf16.msra.mxu0 %v722
        %862 = vmatprep.subr.bf16.mxu0 0
        %863 = vmatpush1.bf16.msra.mxu0 %v723
        %864 = vmatprep.subr.bf16.mxu0 0
        %865 = vmatpush1.bf16.msra.mxu0 %v724
        %866 = vmatprep.subr.bf16.mxu0 0
        %867 = vmatpush1.bf16.msra.mxu0 %v725
        %868 = vmatprep.mubr.bf16.mxu0 %v835
        %869 = vmatmul.mubr.bf16.gmra.mrb[0].mxu0 %v834
        %v870 = vpop.f32.mrb[0].mxu0
        %v871 = vadd.f32 %v429, %v870
        %v872 = vpop.f32.mrb[0].mxu0
        %v873 = vpop.f32.mrb[0].mxu0
        %v874 = vadd.f32 %v429, %v873
        %v875 = vpop.f32.mrb[0].mxu0
        %876 = vdwg.mxu0
        %v877 = vmax.f32 %v871, 0.0
        %v878 = vmax.f32 %v874, 0.0
        %s879 = scalar_lea.vmem %s363, 16 [#allocation4]
        %v880 = vld [vmem:[%s879] sm:$0xf]
        %v881 = vld [vmem:[%s879 + $0x4] sm:$0xf]
        %v882 = vunpack.c.l.bf16 %v880
        %v883 = vunpack.c.l.bf16 %v881
        %v884 = vpack.c.bf16 %v883, %v882
        %885 = vmatprep.subr.bf16.mxu0 0
        %886 = vmatpush1.bf16.msra.mxu0 %v537
        %887 = vmatprep.subr.bf16.mxu0 0
        %888 = vmatpush1.bf16.msra.mxu0 %v538
        %889 = vmatprep.subr.bf16.mxu0 0
        %890 = vmatpush1.bf16.msra.mxu0 %v539
        %891 = vmatprep.subr.bf16.mxu0 0
        %892 = vmatpush1.bf16.msra.mxu0 %v540
        %893 = vmatprep.subr.bf16.mxu0 0
        %894 = vmatpush1.bf16.msra.mxu0 %v541
        %895 = vmatprep.subr.bf16.mxu0 0
        %896 = vmatpush1.bf16.msra.mxu0 %v542
        %897 = vmatprep.subr.bf16.mxu0 0
        %898 = vmatpush1.bf16.msra.mxu0 %v543
        %899 = vmatprep.subr.bf16.mxu0 0
        %900 = vmatpush1.bf16.msra.mxu0 %v544
        %901 = vmatprep.subr.bf16.mxu0 0
        %902 = vmatpush1.bf16.msra.mxu0 %v545
        %903 = vmatprep.subr.bf16.mxu0 0
        %904 = vmatpush1.bf16.msra.mxu0 %v546
        %905 = vmatprep.subr.bf16.mxu0 0
        %906 = vmatpush1.bf16.msra.mxu0 %v547
        %907 = vmatprep.subr.bf16.mxu0 0
        %908 = vmatpush1.bf16.msra.mxu0 %v548
        %909 = vmatprep.subr.bf16.mxu0 0
        %910 = vmatpush1.bf16.msra.mxu0 %v549
        %911 = vmatprep.subr.bf16.mxu0 0
        %912 = vmatpush1.bf16.msra.mxu0 %v550
        %913 = vmatprep.subr.bf16.mxu0 0
        %914 = vmatpush1.bf16.msra.mxu0 %v551
        %915 = vmatprep.subr.bf16.mxu0 0
        %916 = vmatpush1.bf16.msra.mxu0 %v552
        %917 = vmatprep.mubr.bf16.mxu0 %v834
        %918 = vmatmul.mubr.bf16.gmra.mrb[0].mxu0 %v884
        %v919 = vpop.f32.mrb[0].mxu0
        %v920 = vadd.f32 %v422, %v919
        %v921 = vpop.f32.mrb[0].mxu0
        %v922 = vpop.f32.mrb[0].mxu0
        %v923 = vadd.f32 %v422, %v922
        %v924 = vpop.f32.mrb[0].mxu0
        %925 = vdwg.mxu0
        %v926 = vmax.f32 %v920, 0.0
        %v927 = vmax.f32 %v923, 0.0
        %v928 = vpack.c.bf16 %v927, %v926
        %v929 = vpack.c.bf16 %v878, %v877
        %930 = vmatprep.subr.bf16.mxu0 0
        %931 = vmatpush1.bf16.msra.mxu0 %v710
        %932 = vmatprep.subr.bf16.mxu0 0
        %933 = vmatpush1.bf16.msra.mxu0 %v711
        %934 = vmatprep.subr.bf16.mxu0 0
        %935 = vmatpush1.bf16.msra.mxu0 %v712
        %936 = vmatprep.subr.bf16.mxu0 0
        %937 = vmatpush1.bf16.msra.mxu0 %v713
        %938 = vmatprep.subr.bf16.mxu0 0
        %939 = vmatpush1.bf16.msra.mxu0 %v714
        %940 = vmatprep.subr.bf16.mxu0 0
        %941 = vmatpush1.bf16.msra.mxu0 %v715
        %942 = vmatprep.subr.bf16.mxu0 0
        %943 = vmatpush1.bf16.msra.mxu0 %v716
        %944 = vmatprep.subr.bf16.mxu0 0
        %945 = vmatpush1.bf16.msra.mxu0 %v717
        %946 = vmatprep.subr.bf16.mxu0 0
        %947 = vmatpush1.bf16.msra.mxu0 %v718
        %948 = vmatprep.subr.bf16.mxu0 0
        %949 = vmatpush1.bf16.msra.mxu0 %v719
        %950 = vmatprep.subr.bf16.mxu0 0
        %951 = vmatpush1.bf16.msra.mxu0 %v720
        %952 = vmatprep.subr.bf16.mxu0 0
        %953 = vmatpush1.bf16.msra.mxu0 %v721
        %954 = vmatprep.subr.bf16.mxu0 0
        %955 = vmatpush1.bf16.msra.mxu0 %v722
        %956 = vmatprep.subr.bf16.mxu0 0
        %957 = vmatpush1.bf16.msra.mxu0 %v723
        %958 = vmatprep.subr.bf16.mxu0 0
        %959 = vmatpush1.bf16.msra.mxu0 %v724
        %960 = vmatprep.subr.bf16.mxu0 0
        %961 = vmatpush1.bf16.msra.mxu0 %v725
        %962 = vmatprep.mubr.bf16.mxu0 %v929
        %963 = vmatmul.mubr.bf16.gmra.mrb[0].mxu0 %v928
        %v964 = vpop.f32.mrb[0].mxu0
        %v965 = vadd.f32 %v429, %v964
        %v966 = vpop.f32.mrb[0].mxu0
        %v967 = vpop.f32.mrb[0].mxu0
        %v968 = vadd.f32 %v429, %v967
        %v969 = vpop.f32.mrb[0].mxu0
        %970 = vdwg.mxu0
        %v971 = vmax.f32 %v965, 0.0
        %v972 = vmax.f32 %v968, 0.0
        %s973 = scalar_lea.vmem %s363, 24 [#allocation4]
        %v974 = vld [vmem:[%s973] sm:$0xf]
        %v975 = vld [vmem:[%s973 + $0x4] sm:$0xf]
        %v976 = vunpack.c.l.bf16 %v974
        %v977 = vunpack.c.l.bf16 %v975
        %v978 = vpack.c.bf16 %v977, %v976
        %979 = vmatprep.subr.bf16.mxu0 0
        %980 = vmatpush1.bf16.msra.mxu0 %v537
        %981 = vmatprep.subr.bf16.mxu0 0
        %982 = vmatpush1.bf16.msra.mxu0 %v538
        %983 = vmatprep.subr.bf16.mxu0 0
        %984 = vmatpush1.bf16.msra.mxu0 %v539
        %985 = vmatprep.subr.bf16.mxu0 0
        %986 = vmatpush1.bf16.msra.mxu0 %v540
        %987 = vmatprep.subr.bf16.mxu0 0
        %988 = vmatpush1.bf16.msra.mxu0 %v541
        %989 = vmatprep.subr.bf16.mxu0 0
        %990 = vmatpush1.bf16.msra.mxu0 %v542
        %991 = vmatprep.subr.bf16.mxu0 0
        %992 = vmatpush1.bf16.msra.mxu0 %v543
        %993 = vmatprep.subr.bf16.mxu0 0
        %994 = vmatpush1.bf16.msra.mxu0 %v544
        %995 = vmatprep.subr.bf16.mxu0 0
        %996 = vmatpush1.bf16.msra.mxu0 %v545
        %997 = vmatprep.subr.bf16.mxu0 0
        %998 = vmatpush1.bf16.msra.mxu0 %v546
        %999 = vmatprep.subr.bf16.mxu0 0
        %1000 = vmatpush1.bf16.msra.mxu0 %v547
        %1001 = vmatprep.subr.bf16.mxu0 0
        %1002 = vmatpush1.bf16.msra.mxu0 %v548
        %1003 = vmatprep.subr.bf16.mxu0 0
        %1004 = vmatpush1.bf16.msra.mxu0 %v549
        %1005 = vmatprep.subr.bf16.mxu0 0
        %1006 = vmatpush1.bf16.msra.mxu0 %v550
        %1007 = vmatprep.subr.bf16.mxu0 0
        %1008 = vmatpush1.bf16.msra.mxu0 %v551
        %1009 = vmatprep.subr.bf16.mxu0 0
        %1010 = vmatpush1.bf16.msra.mxu0 %v552
        %1011 = vmatprep.mubr.bf16.mxu0 %v928
        %1012 = vmatmul.mubr.bf16.gmra.mrb[0].mxu0 %v978
        %v1013 = vpop.f32.mrb[0].mxu0
        %v1014 = vadd.f32 %v422, %v1013
        %v1015 = vpop.f32.mrb[0].mxu0
        %v1016 = vpop.f32.mrb[0].mxu0
        %v1017 = vadd.f32 %v422, %v1016
        %v1018 = vpop.f32.mrb[0].mxu0
        %1019 = vdwg.mxu0
        %v1020 = vmax.f32 %v1014, 0.0
        %v1021 = vmax.f32 %v1017, 0.0
        %v1022 = vpack.c.bf16 %v1021, %v1020
        %v1023 = vpack.c.bf16 %v972, %v971
        %1024 = vmatprep.subr.bf16.mxu0 0
        %1025 = vmatpush1.bf16.msra.mxu0 %v710
        %1026 = vmatprep.subr.bf16.mxu0 0
        %1027 = vmatpush1.bf16.msra.mxu0 %v711
        %1028 = vmatprep.subr.bf16.mxu0 0
        %1029 = vmatpush1.bf16.msra.mxu0 %v712
        %1030 = vmatprep.subr.bf16.mxu0 0
        %1031 = vmatpush1.bf16.msra.mxu0 %v713
        %1032 = vmatprep.subr.bf16.mxu0 0
        %1033 = vmatpush1.bf16.msra.mxu0 %v714
        %1034 = vmatprep.subr.bf16.mxu0 0
        %1035 = vmatpush1.bf16.msra.mxu0 %v715
        %1036 = vmatprep.subr.bf16.mxu0 0
        %1037 = vmatpush1.bf16.msra.mxu0 %v716
        %1038 = vmatprep.subr.bf16.mxu0 0
        %1039 = vmatpush1.bf16.msra.mxu0 %v717
        %1040 = vmatprep.subr.bf16.mxu0 0
        %1041 = vmatpush1.bf16.msra.mxu0 %v718
        %1042 = vmatprep.subr.bf16.mxu0 0
        %1043 = vmatpush1.bf16.msra.mxu0 %v719
        %1044 = vmatprep.subr.bf16.mxu0 0
        %1045 = vmatpush1.bf16.msra.mxu0 %v720
        %1046 = vmatprep.subr.bf16.mxu0 0
        %1047 = vmatpush1.bf16.msra.mxu0 %v721
        %1048 = vmatprep.subr.bf16.mxu0 0
        %1049 = vmatpush1.bf16.msra.mxu0 %v722
        %1050 = vmatprep.subr.bf16.mxu0 0
        %1051 = vmatpush1.bf16.msra.mxu0 %v723
        %1052 = vmatprep.subr.bf16.mxu0 0
        %1053 = vmatpush1.bf16.msra.mxu0 %v724
        %1054 = vmatprep.subr.bf16.mxu0 0
        %1055 = vmatpush1.bf16.msra.mxu0 %v725
        %1056 = vmatprep.mubr.bf16.mxu0 %v1023
        %1057 = vmatmul.mubr.bf16.gmra.mrb[0].mxu0 %v1022
        %v1058 = vpop.f32.mrb[0].mxu0
        %v1059 = vadd.f32 %v429, %v1058
        %v1060 = vpop.f32.mrb[0].mxu0
        %v1061 = vpop.f32.mrb[0].mxu0
        %v1062 = vadd.f32 %v429, %v1061
        %v1063 = vpop.f32.mrb[0].mxu0
        %1064 = vdwg.mxu0
        %v1065 = vmax.f32 %v1059, 0.0
        %v1066 = vmax.f32 %v1062, 0.0
        %1067 = vst [vmem:[#allocation2] sm:$0xff] %v1020
        %1068 = vst [vmem:[#allocation2 + $0x8] sm:$0xff] %v1021
        %1069 = vst [vmem:[#allocation3] sm:$0xff] %v1065
        %1070 = vst [vmem:[#allocation3 + $0x8] sm:$0xff] %v1066
        %p1071 = scmp.eq.s32.totalorder %s28, 1
        // Predicated region
        $region94: #{emrnn_forward.1} parent=84 // pred_check
          %p1072 = pneg %p1071
        $region95: #{emrnn_forward.1} parent=84 // pred_check_branch
          %1074 = sbr.rel (%p1072) target = $region97
        $region96: #{emrnn_forward.1} parent=84 // pred_region
          %v1075 = vpack.c.bf16 %v1066, %v1065
          %v1076 = vld [vmem:[%s5] sm:$0xf]
          %v1077 = vld [vmem:[%s5 + $0x4] sm:$0xf]
          %v1078 = vld [vmem:[%s5 + $0x8] sm:$0xf]
          %v1079 = vld [vmem:[%s5 + $0xc] sm:$0xf]
          %v1080 = vld [vmem:[%s5 + $0x10] sm:$0xf]
          %v1081 = vld [vmem:[%s5 + $0x14] sm:$0xf]
          %v1082 = vld [vmem:[%s5 + $0x18] sm:$0xf]
          %v1083 = vld [vmem:[%s5 + $0x1c] sm:$0xf]
          %v1084 = vld [vmem:[%s5 + $0x20] sm:$0xf]
          %v1085 = vld [vmem:[%s5 + $0x24] sm:$0xf]
          %v1086 = vld [vmem:[%s5 + $0x28] sm:$0xf]
          %v1087 = vld [vmem:[%s5 + $0x2c] sm:$0xf]
          %v1088 = vld [vmem:[%s5 + $0x30] sm:$0xf]
          %v1089 = vld [vmem:[%s5 + $0x34] sm:$0xf]
          %v1090 = vld [vmem:[%s5 + $0x38] sm:$0xf]
          %v1091 = vld [vmem:[%s5 + $0x3c] sm:$0xf]
          %v1092 = vld [vmem:[%s6] sm:$0x1]
          %v1094 = vlaneseq
          %v1095 = vshrl.u32 %v1094, 7
          %v1096 = vsub.s32 0, %v1095
          %v1097 = vrot.slane %v1092, %v1096
          %v1115 = vunpack.c.l.b16 %v1076
          %v1116 = vunpack.c.l.b16 %v1077
          %v1117 = vunpack.c.l.b16 %v1078
          %v1118 = vunpack.c.l.b16 %v1079
          %v1119 = vunpack.c.l.b16 %v1080
          %v1120 = vunpack.c.l.b16 %v1081
          %v1121 = vunpack.c.l.b16 %v1082
          %v1122 = vunpack.c.l.b16 %v1083
          %v1123 = vunpack.c.l.b16 %v1084
          %v1124 = vunpack.c.l.b16 %v1085
          %v1125 = vunpack.c.l.b16 %v1086
          %v1126 = vunpack.c.l.b16 %v1087
          %v1127 = vunpack.c.l.b16 %v1088
          %v1128 = vunpack.c.l.b16 %v1089
          %v1129 = vunpack.c.l.b16 %v1090
          %v1130 = vunpack.c.l.b16 %v1091
          %v1131 = vpack.c.b16 %v1116, %v1115
          %v1132 = vpack.c.b16 %v1118, %v1117
          %v1133 = vpack.c.b16 %v1120, %v1119
          %v1134 = vpack.c.b16 %v1122, %v1121
          %v1135 = vpack.c.b16 %v1124, %v1123
          %v1136 = vpack.c.b16 %v1126, %v1125
          %v1137 = vpack.c.b16 %v1128, %v1127
          %v1138 = vpack.c.b16 %v1130, %v1129
          %1147 = vmatprep.subr.bf16.mxu0 0
          %1148 = vmatpush1.bf16.msra.mxu0 %v1131
          %1149 = vmatprep.subr.bf16.mxu0 0
          %1150 = vmatpush1.bf16.msra.mxu0 %v1132
          %1151 = vmatprep.subr.bf16.mxu0 0
          %1152 = vmatpush1.bf16.msra.mxu0 %v1133
          %1153 = vmatprep.subr.bf16.mxu0 0
          %1154 = vmatpush1.bf16.msra.mxu0 %v1134
          %1155 = vmatprep.subr.bf16.mxu0 0
          %1156 = vmatpush1.bf16.msra.mxu0 %v1135
          %1157 = vmatprep.subr.bf16.mxu0 0
          %1158 = vmatpush1.bf16.msra.mxu0 %v1136
          %1159 = vmatprep.subr.bf16.mxu0 0
          %1160 = vmatpush1.bf16.msra.mxu0 %v1137
          %1161 = vmatprep.subr.bf16.mxu0 0
          %1162 = vmatpush1.bf16.msra.mxu0 %v1138
          %1163 = vmatprep.subr.bf16.mxu0 0
          %1164 = vmatpush1.bf16.msra.mxu0 0
          %1165 = vmatprep.subr.bf16.mxu0 0
          %1166 = vmatpush1.bf16.msra.mxu0 0
          %1167 = vmatprep.subr.bf16.mxu0 0
          %1168 = vmatpush1.bf16.msra.mxu0 0
          %1169 = vmatprep.subr.bf16.mxu0 0
          %1170 = vmatpush1.bf16.msra.mxu0 0
          %1171 = vmatprep.subr.bf16.mxu0 0
          %1172 = vmatpush1.bf16.msra.mxu0 0
          %1173 = vmatprep.subr.bf16.mxu0 0
          %1174 = vmatpush1.bf16.msra.mxu0 0
          %1175 = vmatprep.subr.bf16.mxu0 0
          %1176 = vmatpush1.bf16.msra.mxu0 0
          %1177 = vmatprep.subr.bf16.mxu0 0
          %1178 = vmatpush1.bf16.msra.mxu0 0
          %1179 = vmatprep.mubr.bf16.mxu0 0
          %1180 = vmatmul.mubr.bf16.gmra.mrb[0].mxu0 %v1075
          %v1181 = vpop.f32.mrb[0].mxu0
          %v1182 = vadd.f32 %v1097, %v1181
          %v1183 = vpop.f32.mrb[0].mxu0
          %v1184 = vpop.f32.mrb[0].mxu0
          %v1185 = vadd.f32 %v1097, %v1184
          %v1186 = vpop.f32.mrb[0].mxu0
          %1187 = vdwg.mxu0
          %1188 = vmax.xlane.f32.xlu0 %v1182
          %v1189 = vpop.xlane.xlu0 %1188
          %1190 = vmax.xlane.f32.xlu0 %v1185
          %v1191 = vpop.xlane.xlu0 %1190
          %v1192 = vsub.f32 %v1182, %v1189
          %v1193 = vsub.f32 %v1185, %v1191
          %v1194 = vmul.f32 %v1192, 1.442695
          %v1195 = vpow.pop %v1194
          %v1196 = vmul.f32 %v1193, 1.442695
          %v1197 = vpow.pop %v1196
          %1198 = vadd.xlane.f32.xlu0 %v1195
          %v1199 = vpop.xlane.xlu0 %1198
          %1200 = vadd.xlane.f32.xlu0 %v1197
          %v1201 = vpop.xlane.xlu0 %1200
          %v1202 = vlog2.pop %v1199
          %v1203 = vmul.f32 %v1202, 0.6931472
          %v1204 = vlog2.pop %v1201
          %v1205 = vmul.f32 %v1204, 0.6931472
          %v1206 = vadd.f32 %v1203, %v1189
          %v1207 = vadd.f32 %v1205, %v1191
          %v1208 = vsub.f32 %v1182, %v1206
          %v1209 = vsub.f32 %v1185, %v1207
          %1210 = vst [vmem:[%s405] sm:$0xff] %v1208
          %1211 = vst [vmem:[%s405 + $0x8] sm:$0xff] %v1209
          %1212 = vst [vmem:[%s398] sm:$0xff] %v1020
          %1213 = vst [vmem:[%s398 + $0x8] sm:$0xff] %v1021
          %s1214 = scalar_lea.vmem %s398, 16 [#allocation5]
          %1215 = vst [vmem:[%s1214] sm:$0xff] %v1065
          %1216 = vst [vmem:[%s1214 + $0x8] sm:$0xff] %v1066
        $region97: #{emrnn_forward.1} parent=84 // pred_fallthru
          _
        %s1217 = smul.u32 2, %s27
        %p1218 = scmp.lt.s32.totalorder %s1217, 3
        %s1219 = scalar_select %p1218, %s1217, 3
        %s1220 = smul.addr %s1219, 8
        %s1221 = scalar_lea.vmem %s7, %s1220
        %s1222 = sand.u32 %s223, 1
        %s1223 = scalar_lea.sflag [#allocation6], %s1222
        %s1224 = sand.u32 %s223, 1
        %s1225 = smul.addr %s1224, 32
        %s1226 = scalar_lea.vmem [#allocation5], %s1225
        // Predicated region
        $region98: #{emrnn_forward.1} parent=84 // pred_check
          %p1227 = pneg %p207
        $region99: #{emrnn_forward.1} parent=84 // pred_check_branch
          %1229 = sbr.rel (%p1227) target = $region101
        $region100: #{emrnn_forward.1} parent=84 // pred_region
          %s1230 = smul.u32 2, %s27
        $region101: #{emrnn_forward.1} parent=84 // pred_fallthru
          _
        // Predicated region
        $region102: #{emrnn_forward.1} parent=84 // pred_check
          %p1231 = pneg %p233
        $region103: #{emrnn_forward.1} parent=84 // pred_check_branch
          %1233 = sbr.rel (%p1231) target = $region105
        $region104: #{emrnn_forward.1} parent=84 // pred_region
          #allocation8 [shape = 'u32[6]{0}', space=smem, size = 0x18, scoped, tag = 'DMA stride descriptor']
          %s1234 = smul.u32 2, %s27
          %s1236 = ssub.s32 512, 512
          %1237 = vsyncadd %s1223, %s1236
          %s1238 = smul.addr %s1234, 128
          %s1239 = scalar_lea.hbm %s8, %s1238
          %s1241 = sshll.u32 1, 14
          %s1242 = sxor.u32 4294967295, %s1241
          %s1245 = sshll.u32 7, 18
          %s1246 = sxor.u32 4294967295, %s1245
          %s1247 = sand.u32 0, %s1246
          %s1249 = sor.u32 %s1247, 0
          %s1251 = sshll.u32 3, 24
          %s1252 = sxor.u32 4294967295, %s1251
          %s1253 = sand.u32 %s1249, %s1252
          %s1255 = sor.u32 %s1253, 0
          %s1256 = sshll.u32 %s1226, 4
          %s1257 = int_to_ptr.vmem [resolvable:$true] %s1256
          %1263 = sst [smem:[#allocation8]] 256
          %s1264 = scalar_lea.smem [#allocation8], 1
          %1265 = sst [smem:[%s1264]] 512
          %s1266 = scalar_lea.smem [#allocation8], 2
          %1267 = sst [smem:[%s1266]] 2
          %s1268 = scalar_lea.smem [#allocation8], 3
          %1269 = sst [smem:[%s1268]] 128
          %s1270 = scalar_lea.smem [#allocation8], 4
          %1271 = sst [smem:[%s1270]] 128
          %s1272 = scalar_lea.smem [#allocation8], 5
          %1273 = sst [smem:[%s1272]] 8
          %1275 = dma.general %s1257, 512, %s1239, %s1223, [#allocation7], [#allocation8], %s1255, 0
        $region105: #{emrnn_forward.1} parent=84 // pred_fallthru
          _
      $region85: #{emrnn_forward.1} parent=5 // pred_fallthru
        _
      %p1276 = scmp.le.s32.totalorder 2, %s18
      // Predicated region
      $region106: #{emrnn_forward.1} parent=5 // pred_check
        %p1277 = pneg %p1276
      $region107: #{emrnn_forward.1} parent=5 // pred_check_branch
        %1279 = sbr.rel (%p1277) target = $region109
      $region108: #{emrnn_forward.1} parent=5 // pred_region
        %s1280 = ssub.s32 %s18, 2
        // Predicated region
        $region110: #{emrnn_forward.1} parent=108 // pred_check
          %p1281 = pneg %p213
        $region111: #{emrnn_forward.1} parent=108 // pred_check_branch
          %1283 = sbr.rel (%p1281) target = $region113
        $region112: #{emrnn_forward.1} parent=108 // pred_region
          %s1284 = smul.u32 2, %s29
          %p1285 = scmp.lt.s32.totalorder %s1284, 3
          %s1286 = scalar_select %p1285, %s1284, 3
          %s1287 = smul.addr %s1286, 8
          %s1288 = scalar_lea.vmem %s7, %s1287
        $region113: #{emrnn_forward.1} parent=108 // pred_fallthru
          _
        // Predicated region
        $region114: #{emrnn_forward.1} parent=108 // pred_check
          %p1289 = pneg %p239
        $region115: #{emrnn_forward.1} parent=108 // pred_check_branch
          %1291 = sbr.rel (%p1289) target = $region117
        $region116: #{emrnn_forward.1} parent=108 // pred_region
          %s1292 = sand.u32 %s224, 1
          %s1293 = scalar_lea.sflag [#allocation6], %s1292
          %s1294 = sand.u32 %s224, 1
          %s1295 = smul.addr %s1294, 32
          %s1296 = scalar_lea.vmem [#allocation5], %s1295
          %1297 = dma.done %s1293, 512
        $region117: #{emrnn_forward.1} parent=108 // pred_fallthru
          _
      $region109: #{emrnn_forward.1} parent=5 // pred_fallthru
        _
    $region6: #{emrnn_forward.1} parent=1 // loop_footer
      %s22 = sadd.s32 1, %s18
    $region7: #{emrnn_forward.1} parent=1 // loop_footer_branch
      %17 = sbr.rel target = $region3
    $region8: #{emrnn_forward.1} parent=1 // loop_exit
      _
    %1298 = vsyncpa [#allocation6], 1
    %s1299 = scalar_lea.sflag [#allocation6], 1
    %1300 = vsyncpa %s1299, 1

</llo_original>
